<compile_context>
chip_gen: v7x
topology: tpu7x:2x2x1
jax: 0.10.0
libtpu: 0.0.40
codegen_flags: <defaults>
</compile_context>

<pallas_src>
import math
import functools

import jax
import jax.numpy as jnp
import numpy as np
from jax.experimental import pallas as pl
from jax.experimental.pallas import tpu as pltpu


# ----------------------------- config ---------------------------------------
CFG = dict(
    vocab_size=256,
    dim=32,
    num_heads=4,
    num_layers=2,
    max_sequence_length=16,
)


# --------------------------- helpers (glue) ----------------------------------
def fast_sin(x):
    """Taylor-series sine approximation, identical to FastQuantumOps.fast_sin."""
    x = jnp.mod(x, 2.0 * jnp.pi)
    x = jnp.where(x > jnp.pi, x - 2.0 * jnp.pi, x)
    return x * (1.0 - x * x / 6.0)


def make_attention_patterns(dim, num_heads):
    """FastQuantumAttention._init_patterns (identical for every layer)."""
    head_dim = dim // num_heads
    t = jnp.linspace(0.0, 2.0 * jnp.pi, head_dim)
    pats = []
    for h in range(num_heads):
        phase = 2.0 * jnp.pi * h / num_heads
        pats.append(fast_sin(t + phase))
    return jnp.stack(pats).astype(jnp.float32)            # (H, head_dim)


def make_encode_pattern(dim):
    """h_pattern == v_pattern of FastQuantumState.encode_state."""
    h = jnp.linspace(0.0, 1.0, dim)
    return fast_sin(h * jnp.pi).astype(jnp.float32)        # (D,)


def _round_up(n, m):
    return -(-n // m) * m


# ------------------------------ kernel ---------------------------------------
def _layernorm_cols(v, g, b, eps=1e-5):
    """Per-token (lane column) LayerNorm over the feature (sublane) axis."""
    mu = jnp.mean(v, axis=0, keepdims=True)
    d = v - mu
    var = jnp.mean(d * d, axis=0, keepdims=True)
    return d * jax.lax.rsqrt(var + eps) * g + b            # rsqrt -> EUP slot


def qllm_kernel(x_ref, const_ref, w_ref, bvoc_ref, out_ref,
                *, num_heads, head_dim, num_layers):
    consts = const_ref[...]                                # (D, 8) f32
    hpat = consts[:, 0:1]                                  # (D, 1) encode pattern
    patf = consts[:, 1:2]                                  # (D, 1) concat'd head patterns
    g_in, b_in = consts[:, 2:3], consts[:, 3:4]
    g_out, b_out = consts[:, 4:5], consts[:, 5:6]

    x = x_ref[...]                                         # (D, TN) f32, tokens on lanes

    # ----- input LayerNorm -----
    x = _layernorm_cols(x, g_in, b_in)

    # ----- FastQuantumState.encode_state (h_proj == v_proj == proj) -----
    proj = jnp.sum(x * hpat, axis=0, keepdims=True)        # (1, TN)
    out = proj + x                                         # broadcast over sublanes
    l2sq = jnp.sum(out * out, axis=0, keepdims=True)
    x = out * jax.lax.rsqrt(l2sq + 1e-12)

    inv_sqrt_hd = 1.0 / math.sqrt(head_dim)
    H, hd = num_heads, head_dim

    # hoist the (D, 1) lane-broadcasts out of the layer loop (no CSE for
    # broadcast_in_dim; these are reused num_layers times).
    patf_b = jnp.broadcast_to(patf, x.shape)
    g_out_b = jnp.broadcast_to(g_out, x.shape)
    b_out_b = jnp.broadcast_to(b_out, x.shape)

    # ----- quantum attention layers (attention is over heads, per token) -----
    for _ in range(num_layers):
        xm = x * patf_b                                    # one full-width multiply
        xh = [xm[h * hd:(h + 1) * hd, :] for h in range(H)]   # (hd, TN) sublane slices

        # symmetric scores: compute upper triangle only (10 reductions, not 16)
        scores = [[None] * H for _ in range(H)]
        for h in range(H):
            for g in range(h, H):
                s = jnp.sum(xh[h] * xh[g], axis=0, keepdims=True) * inv_sqrt_hd
                scores[h][g] = s
                scores[g][h] = s

        # per-token softmax over heads; scores are bounded by the preceding
        # L2 / LayerNorm normalizations, so the running max is dropped.
        a_parts = []
        for h in range(H):
            es = [jnp.exp(scores[h][g]) for g in range(H)]     # (1, TN) lane-dense
            denom = es[0]
            for g in range(1, H):
                denom = denom + es[g]
            inv = pl.reciprocal(denom, approx=True)            # EUP vrcp
            a_h = (es[0] * inv) * xh[0]
            for g in range(1, H):
                a_h = a_h + (es[g] * inv) * xh[g]
            a_parts.append(a_h)                                # (hd, TN), stays in vregs
        attn_out = jnp.concatenate(a_parts, axis=0)            # (D, TN) sublane concat

        x = x + attn_out
        # quantum_interference(x_new, attn_out)
        x = (jnp.abs(x) + jnp.abs(attn_out)) * jnp.cos((x - attn_out) * 0.5)
        x = _layernorm_cols(x, g_out_b, b_out_b)

    # ----- output projection: W(V,D) @ x(D,TN); bf16 MXU inputs, f32 acc -----
    logits = jnp.dot(w_ref[...], x.astype(jnp.bfloat16),
                     preferred_element_type=jnp.float32)       # (V, TN)
    out_ref[...] = (logits + bvoc_ref[...]).astype(out_ref.dtype)


# ------------------------------ wrapper ---------------------------------------
def fast_quantum_llm_forward(input_ids, params, cfg, *, tile_n=2048,
                             out_dtype=jnp.bfloat16):
    B, L = input_ids.shape
    D, H, V = cfg["dim"], cfg["num_heads"], cfg["vocab_size"]
    head_dim = D // H
    num_layers = cfg["num_layers"]

    # glue: embedding lookup + positional embedding, transposed so the token
    # axis rides the 128-lane axis inside the kernel.
    # TODO(synk): fuse the tok_emb row gather into the kernel via
    # scalar-prefetched ids (pl.Element index_map) to save one HBM round trip.
    x0 = params["tok_emb"][input_ids] + params["pos_emb"][:, :L, :]   # (B, L, D)
    N = B * L
    x0t = x0.reshape(N, D).astype(jnp.float32).T                      # (D, N)

    # tile sizing: lane-axis tiles are multiples of 128; aim for big tiles but
    # always give the grid >=2 steps when there is enough work so
    # ("parallel",) can shard rows across both v7x TensorCores.
    tile_n = max(128, (tile_n // 128) * 128)
    Np0 = _round_up(N, 128)
    steps = -(-Np0 // tile_n)
    if steps == 1 and Np0 >= 256:
        steps = 2
    tile = _round_up(-(-Np0 // steps), 128)
    Np = steps * tile
    if Np != N:
        x0t = jnp.pad(x0t, ((0, 0), (0, Np - N)))      # zero tokens: benign, sliced off
    grid = (Np // tile,)

    kern = functools.partial(qllm_kernel, num_heads=H, head_dim=head_dim,
                             num_layers=num_layers)

    logits_t = pl.pallas_call(
        kern,
        out_shape=jax.ShapeDtypeStruct((V, Np), out_dtype),
        grid_spec=pltpu.PrefetchScalarGridSpec(
            num_scalar_prefetch=0,
            grid=grid,
            in_specs=[
                pl.BlockSpec((D, tile), lambda i: (0, i)),     # x^T (tokens on lanes)
                pl.BlockSpec((D, 8), lambda i: (0, 0)),        # packed per-feature consts
                pl.BlockSpec((V, D), lambda i: (0, 0)),        # proj weight (V, D) bf16
                pl.BlockSpec((V, 1), lambda i: (0, 0)),        # proj bias column f32
            ],
            out_specs=pl.BlockSpec((V, tile), lambda i: (0, i)),
        ),
        compiler_params=pltpu.CompilerParams(
            dimension_semantics=("parallel",)),
    )(x0t, params["consts"], params["w"], params["bvoc"])

    # (V, Np) -> (N, V) -> (B, L, V); the transpose is host-side XLA glue.
    return logits_t.T[:N].reshape(B, L, V)


# --------------------------- pure-JAX reference --------------------------------
def reference_forward(input_ids, params, cfg):
    B, L = input_ids.shape
    D, H, V = cfg["dim"], cfg["num_heads"], cfg["vocab_size"]
    hd = D // H

    def ln(v, g, b):
        mu = jnp.mean(v, -1, keepdims=True)
        var = jnp.mean((v - mu) ** 2, -1, keepdims=True)
        return (v - mu) / jnp.sqrt(var + 1e-5) * g + b

    x = params["tok_emb"][input_ids] + params["pos_emb"][:, :L, :]
    x = ln(x, params["gin"], params["bin"])

    hpat = params["h_pattern"]                                      # (D,)
    proj = x @ hpat                                                 # (B, L)
    out = ((proj + proj) * 0.5)[..., None] + x
    x = out / (jnp.linalg.norm(out, axis=-1, keepdims=True) + 1e-8)

    pats = params["patterns"]                                       # (H, hd)
    for _ in range(cfg["num_layers"]):
        xr = x.reshape(B, L, H, hd) * pats[None, None]
        scores = jnp.einsum("blhd,blgd->blhg", xr, xr) / math.sqrt(hd)
        attn = jax.nn.softmax(scores, axis=-1)
        attn_out = jnp.einsum("blhg,blgd->blhd", attn, xr).reshape(B, L, D)
        x = x + attn_out
        x = (jnp.abs(x) + jnp.abs(attn_out)) * jnp.cos((x - attn_out) * 0.5)
        x = ln(x, params["gout"], params["bout"])

    w = params["w"].astype(jnp.float32)                             # (V, D)
    return x @ w.T + params["bvoc"][:, 0]


# --------------------------------- main ----------------------------------------
if __name__ == "__main__":
    cfg = CFG
    D, H, V, MAXL = cfg["dim"], cfg["num_heads"], cfg["vocab_size"], cfg["max_sequence_length"]

    key = jax.random.PRNGKey(0)
    k_emb, k_pos, k_w, k_b, k_ids = jax.random.split(key, 5)

    patterns = make_attention_patterns(D, H)                 # (H, hd)
    h_pattern = make_encode_pattern(D)                       # (D,)
    pat_flat = patterns.reshape(-1)                          # (D,)
    gin = jnp.ones((D,), jnp.float32)
    bin_ = jnp.zeros((D,), jnp.float32)
    gout = jnp.ones((D,), jnp.float32)
    bout = jnp.zeros((D,), jnp.float32)

    # pack the five (D,) constants (+ padding) into one (D, 8) array of columns
    consts = jnp.stack([h_pattern, pat_flat, gin, bin_, gout, bout,
                        jnp.zeros((D,), jnp.float32),
                        jnp.zeros((D,), jnp.float32)], axis=1).astype(jnp.float32)

    params = dict(
        tok_emb=jax.random.normal(k_emb, (V, D), jnp.float32),
        pos_emb=jax.random.normal(k_pos, (1, MAXL, D), jnp.float32),
        patterns=patterns,
        h_pattern=h_pattern,
        gin=gin, bin=bin_, gout=gout, bout=bout,
        consts=consts,
        w=(jax.random.normal(k_w, (V, D), jnp.float32) * 0.05).astype(jnp.bfloat16),  # (V, D)
        bvoc=(jax.random.normal(k_b, (V,), jnp.float32) * 0.01).reshape(V, 1),
    )

    B, L = 2, 8
    input_ids = jax.random.randint(k_ids, (B, L), 0, V)

    logits = fast_quantum_llm_forward(input_ids, params, cfg)
    logits = jax.block_until_ready(logits)

    ref = reference_forward(input_ids, params, cfg)
    np.testing.assert_allclose(np.asarray(logits.astype(jnp.float32)),
                               np.asarray(ref), rtol=5e-2, atol=5e-2)

    # TODO(synk): training cross-entropy over shifted logits and autoregressive
    # generate() (tokenizer, top-k sampling) are host-side glue, not kernel compute.
    print("KERNEL_OK")
</pallas_src>

<mosaic_0001>
module attributes {stable_mosaic.version = 11 : i64} {
  func.func @qllm_kernel(%arg0: i32, %arg1: memref<32x128xf32, #tpu.memory_space<vmem>>, %arg2: memref<32x8xf32, #tpu.memory_space<vmem>>, %arg3: memref<256x32xbf16, #tpu.memory_space<vmem>>, %arg4: memref<256x1xf32, #tpu.memory_space<vmem>>, %arg5: memref<256x128xbf16, #tpu.memory_space<vmem>>) attributes {dimension_semantics = [#tpu.dimension_semantics<parallel>], iteration_bounds = array<i64: 1>, scalar_prefetch = 0 : i64, scratch_operands = 0 : i64, tpu.core_type = #tpu.core_type<tc>, window_params = [{transform_indices = @transform_0, window_bounds = array<i64: 32, 128>}, {pipeline_mode = #tpu.pipeline_mode<synchronous>, transform_indices = @transform_1, window_bounds = array<i64: 32, 8>}, {pipeline_mode = #tpu.pipeline_mode<synchronous>, transform_indices = @transform_2, window_bounds = array<i64: 256, 32>}, {pipeline_mode = #tpu.pipeline_mode<synchronous>, transform_indices = @transform_3, window_bounds = array<i64: 256, 1>}, {transform_indices = @transform_4, window_bounds = array<i64: 256, 128>}]} {
    %c0 = arith.constant 0 : index
    %c0_0 = arith.constant 0 : index
    %0 = vector.load %arg2[%c0, %c0_0] : memref<32x8xf32, #tpu.memory_space<vmem>>, vector<32x8xf32>
    %1 = vector.extract_strided_slice %0 {offsets = [0, 0], sizes = [32, 1], strides = [1, 1]} : vector<32x8xf32> to vector<32x1xf32>
    %2 = vector.extract_strided_slice %0 {offsets = [0, 1], sizes = [32, 1], strides = [1, 1]} : vector<32x8xf32> to vector<32x1xf32>
    %3 = vector.extract_strided_slice %0 {offsets = [0, 2], sizes = [32, 1], strides = [1, 1]} : vector<32x8xf32> to vector<32x1xf32>
    %4 = vector.extract_strided_slice %0 {offsets = [0, 3], sizes = [32, 1], strides = [1, 1]} : vector<32x8xf32> to vector<32x1xf32>
    %5 = vector.extract_strided_slice %0 {offsets = [0, 4], sizes = [32, 1], strides = [1, 1]} : vector<32x8xf32> to vector<32x1xf32>
    %6 = vector.extract_strided_slice %0 {offsets = [0, 5], sizes = [32, 1], strides = [1, 1]} : vector<32x8xf32> to vector<32x1xf32>
    %c0_1 = arith.constant 0 : index
    %c0_2 = arith.constant 0 : index
    %7 = vector.load %arg1[%c0_1, %c0_2] : memref<32x128xf32, #tpu.memory_space<vmem>>, vector<32x128xf32>
    %cst = arith.constant dense<0.000000e+00> : vector<128xf32>
    %8 = vector.multi_reduction <add>, %7, %cst [0] : vector<32x128xf32> to vector<128xf32>
    %9 = vector.shape_cast %8 : vector<128xf32> to vector<1x128xf32>
    %cst_3 = arith.constant 3.200000e+01 : f32
    %10 = vector.broadcast %cst_3 : f32 to vector<1x128xf32>
    %11 = arith.divf %9, %10 : vector<1x128xf32>
    %12 = vector.broadcast %11 : vector<1x128xf32> to vector<32x128xf32>
    %13 = arith.subf %7, %12 : vector<32x128xf32>
    %14 = arith.mulf %13, %13 : vector<32x128xf32>
    %cst_4 = arith.constant dense<0.000000e+00> : vector<128xf32>
    %15 = vector.multi_reduction <add>, %14, %cst_4 [0] : vector<32x128xf32> to vector<128xf32>
    %16 = vector.shape_cast %15 : vector<128xf32> to vector<1x128xf32>
    %cst_5 = arith.constant 3.200000e+01 : f32
    %17 = vector.broadcast %cst_5 : f32 to vector<1x128xf32>
    %18 = arith.divf %16, %17 : vector<1x128xf32>
    %cst_6 = arith.constant 9.99999974E-6 : f32
    %19 = vector.broadcast %cst_6 : f32 to vector<1x128xf32>
    %20 = arith.addf %18, %19 : vector<1x128xf32>
    %21 = math.rsqrt %20 : vector<1x128xf32>
    %22 = vector.broadcast %21 : vector<1x128xf32> to vector<32x128xf32>
    %23 = arith.mulf %13, %22 : vector<32x128xf32>
    %24 = vector.broadcast %3 : vector<32x1xf32> to vector<32x128xf32>
    %25 = arith.mulf %23, %24 : vector<32x128xf32>
    %26 = vector.broadcast %4 : vector<32x1xf32> to vector<32x128xf32>
    %27 = arith.addf %25, %26 : vector<32x128xf32>
    %28 = vector.broadcast %1 : vector<32x1xf32> to vector<32x128xf32>
    %29 = arith.mulf %27, %28 : vector<32x128xf32>
    %cst_7 = arith.constant dense<0.000000e+00> : vector<128xf32>
    %30 = vector.multi_reduction <add>, %29, %cst_7 [0] : vector<32x128xf32> to vector<128xf32>
    %31 = vector.shape_cast %30 : vector<128xf32> to vector<1x128xf32>
    %32 = vector.broadcast %31 : vector<1x128xf32> to vector<32x128xf32>
    %33 = arith.addf %32, %27 : vector<32x128xf32>
    %34 = arith.mulf %33, %33 : vector<32x128xf32>
    %cst_8 = arith.constant dense<0.000000e+00> : vector<128xf32>
    %35 = vector.multi_reduction <add>, %34, %cst_8 [0] : vector<32x128xf32> to vector<128xf32>
    %36 = vector.shape_cast %35 : vector<128xf32> to vector<1x128xf32>
    %cst_9 = arith.constant 9.99999996E-13 : f32
    %37 = vector.broadcast %cst_9 : f32 to vector<1x128xf32>
    %38 = arith.addf %36, %37 : vector<1x128xf32>
    %39 = math.rsqrt %38 : vector<1x128xf32>
    %40 = vector.broadcast %39 : vector<1x128xf32> to vector<32x128xf32>
    %41 = arith.mulf %33, %40 : vector<32x128xf32>
    %42 = vector.shape_cast %2 : vector<32x1xf32> to vector<32x1xf32>
    %43 = vector.broadcast %42 : vector<32x1xf32> to vector<32x128xf32>
    %44 = vector.shape_cast %5 : vector<32x1xf32> to vector<32x1xf32>
    %45 = vector.broadcast %44 : vector<32x1xf32> to vector<32x128xf32>
    %46 = vector.shape_cast %6 : vector<32x1xf32> to vector<32x1xf32>
    %47 = vector.broadcast %46 : vector<32x1xf32> to vector<32x128xf32>
    %48 = arith.mulf %41, %43 : vector<32x128xf32>
    %49 = vector.extract_strided_slice %48 {offsets = [0, 0], sizes = [8, 128], strides = [1, 1]} : vector<32x128xf32> to vector<8x128xf32>
    %50 = vector.extract_strided_slice %48 {offsets = [8, 0], sizes = [8, 128], strides = [1, 1]} : vector<32x128xf32> to vector<8x128xf32>
    %51 = vector.extract_strided_slice %48 {offsets = [16, 0], sizes = [8, 128], strides = [1, 1]} : vector<32x128xf32> to vector<8x128xf32>
    %52 = vector.extract_strided_slice %48 {offsets = [24, 0], sizes = [8, 128], strides = [1, 1]} : vector<32x128xf32> to vector<8x128xf32>
    %53 = arith.mulf %49, %49 : vector<8x128xf32>
    %cst_10 = arith.constant dense<0.000000e+00> : vector<128xf32>
    %54 = vector.multi_reduction <add>, %53, %cst_10 [0] : vector<8x128xf32> to vector<128xf32>
    %55 = vector.shape_cast %54 : vector<128xf32> to vector<1x128xf32>
    %cst_11 = arith.constant 0.353553385 : f32
    %56 = vector.broadcast %cst_11 : f32 to vector<1x128xf32>
    %57 = arith.mulf %55, %56 : vector<1x128xf32>
    %58 = arith.mulf %49, %50 : vector<8x128xf32>
    %cst_12 = arith.constant dense<0.000000e+00> : vector<128xf32>
    %59 = vector.multi_reduction <add>, %58, %cst_12 [0] : vector<8x128xf32> to vector<128xf32>
    %60 = vector.shape_cast %59 : vector<128xf32> to vector<1x128xf32>
    %cst_13 = arith.constant 0.353553385 : f32
    %61 = vector.broadcast %cst_13 : f32 to vector<1x128xf32>
    %62 = arith.mulf %60, %61 : vector<1x128xf32>
    %63 = arith.mulf %49, %51 : vector<8x128xf32>
    %cst_14 = arith.constant dense<0.000000e+00> : vector<128xf32>
    %64 = vector.multi_reduction <add>, %63, %cst_14 [0] : vector<8x128xf32> to vector<128xf32>
    %65 = vector.shape_cast %64 : vector<128xf32> to vector<1x128xf32>
    %cst_15 = arith.constant 0.353553385 : f32
    %66 = vector.broadcast %cst_15 : f32 to vector<1x128xf32>
    %67 = arith.mulf %65, %66 : vector<1x128xf32>
    %68 = arith.mulf %49, %52 : vector<8x128xf32>
    %cst_16 = arith.constant dense<0.000000e+00> : vector<128xf32>
    %69 = vector.multi_reduction <add>, %68, %cst_16 [0] : vector<8x128xf32> to vector<128xf32>
    %70 = vector.shape_cast %69 : vector<128xf32> to vector<1x128xf32>
    %cst_17 = arith.constant 0.353553385 : f32
    %71 = vector.broadcast %cst_17 : f32 to vector<1x128xf32>
    %72 = arith.mulf %70, %71 : vector<1x128xf32>
    %73 = arith.mulf %50, %50 : vector<8x128xf32>
    %cst_18 = arith.constant dense<0.000000e+00> : vector<128xf32>
    %74 = vector.multi_reduction <add>, %73, %cst_18 [0] : vector<8x128xf32> to vector<128xf32>
    %75 = vector.shape_cast %74 : vector<128xf32> to vector<1x128xf32>
    %cst_19 = arith.constant 0.353553385 : f32
    %76 = vector.broadcast %cst_19 : f32 to vector<1x128xf32>
    %77 = arith.mulf %75, %76 : vector<1x128xf32>
    %78 = arith.mulf %50, %51 : vector<8x128xf32>
    %cst_20 = arith.constant dense<0.000000e+00> : vector<128xf32>
    %79 = vector.multi_reduction <add>, %78, %cst_20 [0] : vector<8x128xf32> to vector<128xf32>
    %80 = vector.shape_cast %79 : vector<128xf32> to vector<1x128xf32>
    %cst_21 = arith.constant 0.353553385 : f32
    %81 = vector.broadcast %cst_21 : f32 to vector<1x128xf32>
    %82 = arith.mulf %80, %81 : vector<1x128xf32>
    %83 = arith.mulf %50, %52 : vector<8x128xf32>
    %cst_22 = arith.constant dense<0.000000e+00> : vector<128xf32>
    %84 = vector.multi_reduction <add>, %83, %cst_22 [0] : vector<8x128xf32> to vector<128xf32>
    %85 = vector.shape_cast %84 : vector<128xf32> to vector<1x128xf32>
    %cst_23 = arith.constant 0.353553385 : f32
    %86 = vector.broadcast %cst_23 : f32 to vector<1x128xf32>
    %87 = arith.mulf %85, %86 : vector<1x128xf32>
    %88 = arith.mulf %51, %51 : vector<8x128xf32>
    %cst_24 = arith.constant dense<0.000000e+00> : vector<128xf32>
    %89 = vector.multi_reduction <add>, %88, %cst_24 [0] : vector<8x128xf32> to vector<128xf32>
    %90 = vector.shape_cast %89 : vector<128xf32> to vector<1x128xf32>
    %cst_25 = arith.constant 0.353553385 : f32
    %91 = vector.broadcast %cst_25 : f32 to vector<1x128xf32>
    %92 = arith.mulf %90, %91 : vector<1x128xf32>
    %93 = arith.mulf %51, %52 : vector<8x128xf32>
    %cst_26 = arith.constant dense<0.000000e+00> : vector<128xf32>
    %94 = vector.multi_reduction <add>, %93, %cst_26 [0] : vector<8x128xf32> to vector<128xf32>
    %95 = vector.shape_cast %94 : vector<128xf32> to vector<1x128xf32>
    %cst_27 = arith.constant 0.353553385 : f32
    %96 = vector.broadcast %cst_27 : f32 to vector<1x128xf32>
    %97 = arith.mulf %95, %96 : vector<1x128xf32>
    %98 = arith.mulf %52, %52 : vector<8x128xf32>
    %cst_28 = arith.constant dense<0.000000e+00> : vector<128xf32>
    %99 = vector.multi_reduction <add>, %98, %cst_28 [0] : vector<8x128xf32> to vector<128xf32>
    %100 = vector.shape_cast %99 : vector<128xf32> to vector<1x128xf32>
    %cst_29 = arith.constant 0.353553385 : f32
    %101 = vector.broadcast %cst_29 : f32 to vector<1x128xf32>
    %102 = arith.mulf %100, %101 : vector<1x128xf32>
    %103 = math.exp %57 : vector<1x128xf32>
    %104 = math.exp %62 : vector<1x128xf32>
    %105 = math.exp %67 : vector<1x128xf32>
    %106 = math.exp %72 : vector<1x128xf32>
    %107 = arith.addf %103, %104 : vector<1x128xf32>
    %108 = arith.addf %107, %105 : vector<1x128xf32>
    %109 = arith.addf %108, %106 : vector<1x128xf32>
    %110 = tpu.reciprocal %109 {approx = true} : vector<1x128xf32> -> vector<1x128xf32>
    %111 = arith.mulf %103, %110 : vector<1x128xf32>
    %112 = vector.broadcast %111 : vector<1x128xf32> to vector<8x128xf32>
    %113 = arith.mulf %112, %49 : vector<8x128xf32>
    %114 = arith.mulf %104, %110 : vector<1x128xf32>
    %115 = vector.broadcast %114 : vector<1x128xf32> to vector<8x128xf32>
    %116 = arith.mulf %115, %50 : vector<8x128xf32>
    %117 = arith.addf %113, %116 : vector<8x128xf32>
    %118 = arith.mulf %105, %110 : vector<1x128xf32>
    %119 = vector.broadcast %118 : vector<1x128xf32> to vector<8x128xf32>
    %120 = arith.mulf %119, %51 : vector<8x128xf32>
    %121 = arith.addf %117, %120 : vector<8x128xf32>
    %122 = arith.mulf %106, %110 : vector<1x128xf32>
    %123 = vector.broadcast %122 : vector<1x128xf32> to vector<8x128xf32>
    %124 = arith.mulf %123, %52 : vector<8x128xf32>
    %125 = arith.addf %121, %124 : vector<8x128xf32>
    %126 = math.exp %62 : vector<1x128xf32>
    %127 = math.exp %77 : vector<1x128xf32>
    %128 = math.exp %82 : vector<1x128xf32>
    %129 = math.exp %87 : vector<1x128xf32>
    %130 = arith.addf %126, %127 : vector<1x128xf32>
    %131 = arith.addf %130, %128 : vector<1x128xf32>
    %132 = arith.addf %131, %129 : vector<1x128xf32>
    %133 = tpu.reciprocal %132 {approx = true} : vector<1x128xf32> -> vector<1x128xf32>
    %134 = arith.mulf %126, %133 : vector<1x128xf32>
    %135 = vector.broadcast %134 : vector<1x128xf32> to vector<8x128xf32>
    %136 = arith.mulf %135, %49 : vector<8x128xf32>
    %137 = arith.mulf %127, %133 : vector<1x128xf32>
    %138 = vector.broadcast %137 : vector<1x128xf32> to vector<8x128xf32>
    %139 = arith.mulf %138, %50 : vector<8x128xf32>
    %140 = arith.addf %136, %139 : vector<8x128xf32>
    %141 = arith.mulf %128, %133 : vector<1x128xf32>
    %142 = vector.broadcast %141 : vector<1x128xf32> to vector<8x128xf32>
    %143 = arith.mulf %142, %51 : vector<8x128xf32>
    %144 = arith.addf %140, %143 : vector<8x128xf32>
    %145 = arith.mulf %129, %133 : vector<1x128xf32>
    %146 = vector.broadcast %145 : vector<1x128xf32> to vector<8x128xf32>
    %147 = arith.mulf %146, %52 : vector<8x128xf32>
    %148 = arith.addf %144, %147 : vector<8x128xf32>
    %149 = math.exp %67 : vector<1x128xf32>
    %150 = math.exp %82 : vector<1x128xf32>
    %151 = math.exp %92 : vector<1x128xf32>
    %152 = math.exp %97 : vector<1x128xf32>
    %153 = arith.addf %149, %150 : vector<1x128xf32>
    %154 = arith.addf %153, %151 : vector<1x128xf32>
    %155 = arith.addf %154, %152 : vector<1x128xf32>
    %156 = tpu.reciprocal %155 {approx = true} : vector<1x128xf32> -> vector<1x128xf32>
    %157 = arith.mulf %149, %156 : vector<1x128xf32>
    %158 = vector.broadcast %157 : vector<1x128xf32> to vector<8x128xf32>
    %159 = arith.mulf %158, %49 : vector<8x128xf32>
    %160 = arith.mulf %150, %156 : vector<1x128xf32>
    %161 = vector.broadcast %160 : vector<1x128xf32> to vector<8x128xf32>
    %162 = arith.mulf %161, %50 : vector<8x128xf32>
    %163 = arith.addf %159, %162 : vector<8x128xf32>
    %164 = arith.mulf %151, %156 : vector<1x128xf32>
    %165 = vector.broadcast %164 : vector<1x128xf32> to vector<8x128xf32>
    %166 = arith.mulf %165, %51 : vector<8x128xf32>
    %167 = arith.addf %163, %166 : vector<8x128xf32>
    %168 = arith.mulf %152, %156 : vector<1x128xf32>
    %169 = vector.broadcast %168 : vector<1x128xf32> to vector<8x128xf32>
    %170 = arith.mulf %169, %52 : vector<8x128xf32>
    %171 = arith.addf %167, %170 : vector<8x128xf32>
    %172 = math.exp %72 : vector<1x128xf32>
    %173 = math.exp %87 : vector<1x128xf32>
    %174 = math.exp %97 : vector<1x128xf32>
    %175 = math.exp %102 : vector<1x128xf32>
    %176 = arith.addf %172, %173 : vector<1x128xf32>
    %177 = arith.addf %176, %174 : vector<1x128xf32>
    %178 = arith.addf %177, %175 : vector<1x128xf32>
    %179 = tpu.reciprocal %178 {approx = true} : vector<1x128xf32> -> vector<1x128xf32>
    %180 = arith.mulf %172, %179 : vector<1x128xf32>
    %181 = vector.broadcast %180 : vector<1x128xf32> to vector<8x128xf32>
    %182 = arith.mulf %181, %49 : vector<8x128xf32>
    %183 = arith.mulf %173, %179 : vector<1x128xf32>
    %184 = vector.broadcast %183 : vector<1x128xf32> to vector<8x128xf32>
    %185 = arith.mulf %184, %50 : vector<8x128xf32>
    %186 = arith.addf %182, %185 : vector<8x128xf32>
    %187 = arith.mulf %174, %179 : vector<1x128xf32>
    %188 = vector.broadcast %187 : vector<1x128xf32> to vector<8x128xf32>
    %189 = arith.mulf %188, %51 : vector<8x128xf32>
    %190 = arith.addf %186, %189 : vector<8x128xf32>
    %191 = arith.mulf %175, %179 : vector<1x128xf32>
    %192 = vector.broadcast %191 : vector<1x128xf32> to vector<8x128xf32>
    %193 = arith.mulf %192, %52 : vector<8x128xf32>
    %194 = arith.addf %190, %193 : vector<8x128xf32>
    %195 = tpu.concatenate %125, %148, %171, %194 in 0 : vector<8x128xf32>, vector<8x128xf32>, vector<8x128xf32>, vector<8x128xf32> -> vector<32x128xf32>
    %196 = arith.addf %41, %195 : vector<32x128xf32>
    %197 = math.absf %196 : vector<32x128xf32>
    %198 = math.absf %195 : vector<32x128xf32>
    %199 = arith.addf %197, %198 : vector<32x128xf32>
    %200 = arith.subf %196, %195 : vector<32x128xf32>
    %cst_30 = arith.constant 5.000000e-01 : f32
    %201 = vector.broadcast %cst_30 : f32 to vector<32x128xf32>
    %202 = arith.mulf %200, %201 : vector<32x128xf32>
    %203 = math.cos %202 : vector<32x128xf32>
    %204 = arith.mulf %199, %203 : vector<32x128xf32>
    %cst_31 = arith.constant dense<0.000000e+00> : vector<128xf32>
    %205 = vector.multi_reduction <add>, %204, %cst_31 [0] : vector<32x128xf32> to vector<128xf32>
    %206 = vector.shape_cast %205 : vector<128xf32> to vector<1x128xf32>
    %cst_32 = arith.constant 3.200000e+01 : f32
    %207 = vector.broadcast %cst_32 : f32 to vector<1x128xf32>
    %208 = arith.divf %206, %207 : vector<1x128xf32>
    %209 = vector.broadcast %208 : vector<1x128xf32> to vector<32x128xf32>
    %210 = arith.subf %204, %209 : vector<32x128xf32>
    %211 = arith.mulf %210, %210 : vector<32x128xf32>
    %cst_33 = arith.constant dense<0.000000e+00> : vector<128xf32>
    %212 = vector.multi_reduction <add>, %211, %cst_33 [0] : vector<32x128xf32> to vector<128xf32>
    %213 = vector.shape_cast %212 : vector<128xf32> to vector<1x128xf32>
    %cst_34 = arith.constant 3.200000e+01 : f32
    %214 = vector.broadcast %cst_34 : f32 to vector<1x128xf32>
    %215 = arith.divf %213, %214 : vector<1x128xf32>
    %cst_35 = arith.constant 9.99999974E-6 : f32
    %216 = vector.broadcast %cst_35 : f32 to vector<1x128xf32>
    %217 = arith.addf %215, %216 : vector<1x128xf32>
    %218 = math.rsqrt %217 : vector<1x128xf32>
    %219 = vector.broadcast %218 : vector<1x128xf32> to vector<32x128xf32>
    %220 = arith.mulf %210, %219 : vector<32x128xf32>
    %221 = arith.mulf %220, %45 : vector<32x128xf32>
    %222 = arith.addf %221, %47 : vector<32x128xf32>
    %223 = arith.mulf %222, %43 : vector<32x128xf32>
    %224 = vector.extract_strided_slice %223 {offsets = [0, 0], sizes = [8, 128], strides = [1, 1]} : vector<32x128xf32> to vector<8x128xf32>
    %225 = vector.extract_strided_slice %223 {offsets = [8, 0], sizes = [8, 128], strides = [1, 1]} : vector<32x128xf32> to vector<8x128xf32>
    %226 = vector.extract_strided_slice %223 {offsets = [16, 0], sizes = [8, 128], strides = [1, 1]} : vector<32x128xf32> to vector<8x128xf32>
    %227 = vector.extract_strided_slice %223 {offsets = [24, 0], sizes = [8, 128], strides = [1, 1]} : vector<32x128xf32> to vector<8x128xf32>
    %228 = arith.mulf %224, %224 : vector<8x128xf32>
    %cst_36 = arith.constant dense<0.000000e+00> : vector<128xf32>
    %229 = vector.multi_reduction <add>, %228, %cst_36 [0] : vector<8x128xf32> to vector<128xf32>
    %230 = vector.shape_cast %229 : vector<128xf32> to vector<1x128xf32>
    %cst_37 = arith.constant 0.353553385 : f32
    %231 = vector.broadcast %cst_37 : f32 to vector<1x128xf32>
    %232 = arith.mulf %230, %231 : vector<1x128xf32>
    %233 = arith.mulf %224, %225 : vector<8x128xf32>
    %cst_38 = arith.constant dense<0.000000e+00> : vector<128xf32>
    %234 = vector.multi_reduction <add>, %233, %cst_38 [0] : vector<8x128xf32> to vector<128xf32>
    %235 = vector.shape_cast %234 : vector<128xf32> to vector<1x128xf32>
    %cst_39 = arith.constant 0.353553385 : f32
    %236 = vector.broadcast %cst_39 : f32 to vector<1x128xf32>
    %237 = arith.mulf %235, %236 : vector<1x128xf32>
    %238 = arith.mulf %224, %226 : vector<8x128xf32>
    %cst_40 = arith.constant dense<0.000000e+00> : vector<128xf32>
    %239 = vector.multi_reduction <add>, %238, %cst_40 [0] : vector<8x128xf32> to vector<128xf32>
    %240 = vector.shape_cast %239 : vector<128xf32> to vector<1x128xf32>
    %cst_41 = arith.constant 0.353553385 : f32
    %241 = vector.broadcast %cst_41 : f32 to vector<1x128xf32>
    %242 = arith.mulf %240, %241 : vector<1x128xf32>
    %243 = arith.mulf %224, %227 : vector<8x128xf32>
    %cst_42 = arith.constant dense<0.000000e+00> : vector<128xf32>
    %244 = vector.multi_reduction <add>, %243, %cst_42 [0] : vector<8x128xf32> to vector<128xf32>
    %245 = vector.shape_cast %244 : vector<128xf32> to vector<1x128xf32>
    %cst_43 = arith.constant 0.353553385 : f32
    %246 = vector.broadcast %cst_43 : f32 to vector<1x128xf32>
    %247 = arith.mulf %245, %246 : vector<1x128xf32>
    %248 = arith.mulf %225, %225 : vector<8x128xf32>
    %cst_44 = arith.constant dense<0.000000e+00> : vector<128xf32>
    %249 = vector.multi_reduction <add>, %248, %cst_44 [0] : vector<8x128xf32> to vector<128xf32>
    %250 = vector.shape_cast %249 : vector<128xf32> to vector<1x128xf32>
    %cst_45 = arith.constant 0.353553385 : f32
    %251 = vector.broadcast %cst_45 : f32 to vector<1x128xf32>
    %252 = arith.mulf %250, %251 : vector<1x128xf32>
    %253 = arith.mulf %225, %226 : vector<8x128xf32>
    %cst_46 = arith.constant dense<0.000000e+00> : vector<128xf32>
    %254 = vector.multi_reduction <add>, %253, %cst_46 [0] : vector<8x128xf32> to vector<128xf32>
    %255 = vector.shape_cast %254 : vector<128xf32> to vector<1x128xf32>
    %cst_47 = arith.constant 0.353553385 : f32
    %256 = vector.broadcast %cst_47 : f32 to vector<1x128xf32>
    %257 = arith.mulf %255, %256 : vector<1x128xf32>
    %258 = arith.mulf %225, %227 : vector<8x128xf32>
    %cst_48 = arith.constant dense<0.000000e+00> : vector<128xf32>
    %259 = vector.multi_reduction <add>, %258, %cst_48 [0] : vector<8x128xf32> to vector<128xf32>
    %260 = vector.shape_cast %259 : vector<128xf32> to vector<1x128xf32>
    %cst_49 = arith.constant 0.353553385 : f32
    %261 = vector.broadcast %cst_49 : f32 to vector<1x128xf32>
    %262 = arith.mulf %260, %261 : vector<1x128xf32>
    %263 = arith.mulf %226, %226 : vector<8x128xf32>
    %cst_50 = arith.constant dense<0.000000e+00> : vector<128xf32>
    %264 = vector.multi_reduction <add>, %263, %cst_50 [0] : vector<8x128xf32> to vector<128xf32>
    %265 = vector.shape_cast %264 : vector<128xf32> to vector<1x128xf32>
    %cst_51 = arith.constant 0.353553385 : f32
    %266 = vector.broadcast %cst_51 : f32 to vector<1x128xf32>
    %267 = arith.mulf %265, %266 : vector<1x128xf32>
    %268 = arith.mulf %226, %227 : vector<8x128xf32>
    %cst_52 = arith.constant dense<0.000000e+00> : vector<128xf32>
    %269 = vector.multi_reduction <add>, %268, %cst_52 [0] : vector<8x128xf32> to vector<128xf32>
    %270 = vector.shape_cast %269 : vector<128xf32> to vector<1x128xf32>
    %cst_53 = arith.constant 0.353553385 : f32
    %271 = vector.broadcast %cst_53 : f32 to vector<1x128xf32>
    %272 = arith.mulf %270, %271 : vector<1x128xf32>
    %273 = arith.mulf %227, %227 : vector<8x128xf32>
    %cst_54 = arith.constant dense<0.000000e+00> : vector<128xf32>
    %274 = vector.multi_reduction <add>, %273, %cst_54 [0] : vector<8x128xf32> to vector<128xf32>
    %275 = vector.shape_cast %274 : vector<128xf32> to vector<1x128xf32>
    %cst_55 = arith.constant 0.353553385 : f32
    %276 = vector.broadcast %cst_55 : f32 to vector<1x128xf32>
    %277 = arith.mulf %275, %276 : vector<1x128xf32>
    %278 = math.exp %232 : vector<1x128xf32>
    %279 = math.exp %237 : vector<1x128xf32>
    %280 = math.exp %242 : vector<1x128xf32>
    %281 = math.exp %247 : vector<1x128xf32>
    %282 = arith.addf %278, %279 : vector<1x128xf32>
    %283 = arith.addf %282, %280 : vector<1x128xf32>
    %284 = arith.addf %283, %281 : vector<1x128xf32>
    %285 = tpu.reciprocal %284 {approx = true} : vector<1x128xf32> -> vector<1x128xf32>
    %286 = arith.mulf %278, %285 : vector<1x128xf32>
    %287 = vector.broadcast %286 : vector<1x128xf32> to vector<8x128xf32>
    %288 = arith.mulf %287, %224 : vector<8x128xf32>
    %289 = arith.mulf %279, %285 : vector<1x128xf32>
    %290 = vector.broadcast %289 : vector<1x128xf32> to vector<8x128xf32>
    %291 = arith.mulf %290, %225 : vector<8x128xf32>
    %292 = arith.addf %288, %291 : vector<8x128xf32>
    %293 = arith.mulf %280, %285 : vector<1x128xf32>
    %294 = vector.broadcast %293 : vector<1x128xf32> to vector<8x128xf32>
    %295 = arith.mulf %294, %226 : vector<8x128xf32>
    %296 = arith.addf %292, %295 : vector<8x128xf32>
    %297 = arith.mulf %281, %285 : vector<1x128xf32>
    %298 = vector.broadcast %297 : vector<1x128xf32> to vector<8x128xf32>
    %299 = arith.mulf %298, %227 : vector<8x128xf32>
    %300 = arith.addf %296, %299 : vector<8x128xf32>
    %301 = math.exp %237 : vector<1x128xf32>
    %302 = math.exp %252 : vector<1x128xf32>
    %303 = math.exp %257 : vector<1x128xf32>
    %304 = math.exp %262 : vector<1x128xf32>
    %305 = arith.addf %301, %302 : vector<1x128xf32>
    %306 = arith.addf %305, %303 : vector<1x128xf32>
    %307 = arith.addf %306, %304 : vector<1x128xf32>
    %308 = tpu.reciprocal %307 {approx = true} : vector<1x128xf32> -> vector<1x128xf32>
    %309 = arith.mulf %301, %308 : vector<1x128xf32>
    %310 = vector.broadcast %309 : vector<1x128xf32> to vector<8x128xf32>
    %311 = arith.mulf %310, %224 : vector<8x128xf32>
    %312 = arith.mulf %302, %308 : vector<1x128xf32>
    %313 = vector.broadcast %312 : vector<1x128xf32> to vector<8x128xf32>
    %314 = arith.mulf %313, %225 : vector<8x128xf32>
    %315 = arith.addf %311, %314 : vector<8x128xf32>
    %316 = arith.mulf %303, %308 : vector<1x128xf32>
    %317 = vector.broadcast %316 : vector<1x128xf32> to vector<8x128xf32>
    %318 = arith.mulf %317, %226 : vector<8x128xf32>
    %319 = arith.addf %315, %318 : vector<8x128xf32>
    %320 = arith.mulf %304, %308 : vector<1x128xf32>
    %321 = vector.broadcast %320 : vector<1x128xf32> to vector<8x128xf32>
    %322 = arith.mulf %321, %227 : vector<8x128xf32>
    %323 = arith.addf %319, %322 : vector<8x128xf32>
    %324 = math.exp %242 : vector<1x128xf32>
    %325 = math.exp %257 : vector<1x128xf32>
    %326 = math.exp %267 : vector<1x128xf32>
    %327 = math.exp %272 : vector<1x128xf32>
    %328 = arith.addf %324, %325 : vector<1x128xf32>
    %329 = arith.addf %328, %326 : vector<1x128xf32>
    %330 = arith.addf %329, %327 : vector<1x128xf32>
    %331 = tpu.reciprocal %330 {approx = true} : vector<1x128xf32> -> vector<1x128xf32>
    %332 = arith.mulf %324, %331 : vector<1x128xf32>
    %333 = vector.broadcast %332 : vector<1x128xf32> to vector<8x128xf32>
    %334 = arith.mulf %333, %224 : vector<8x128xf32>
    %335 = arith.mulf %325, %331 : vector<1x128xf32>
    %336 = vector.broadcast %335 : vector<1x128xf32> to vector<8x128xf32>
    %337 = arith.mulf %336, %225 : vector<8x128xf32>
    %338 = arith.addf %334, %337 : vector<8x128xf32>
    %339 = arith.mulf %326, %331 : vector<1x128xf32>
    %340 = vector.broadcast %339 : vector<1x128xf32> to vector<8x128xf32>
    %341 = arith.mulf %340, %226 : vector<8x128xf32>
    %342 = arith.addf %338, %341 : vector<8x128xf32>
    %343 = arith.mulf %327, %331 : vector<1x128xf32>
    %344 = vector.broadcast %343 : vector<1x128xf32> to vector<8x128xf32>
    %345 = arith.mulf %344, %227 : vector<8x128xf32>
    %346 = arith.addf %342, %345 : vector<8x128xf32>
    %347 = math.exp %247 : vector<1x128xf32>
    %348 = math.exp %262 : vector<1x128xf32>
    %349 = math.exp %272 : vector<1x128xf32>
    %350 = math.exp %277 : vector<1x128xf32>
    %351 = arith.addf %347, %348 : vector<1x128xf32>
    %352 = arith.addf %351, %349 : vector<1x128xf32>
    %353 = arith.addf %352, %350 : vector<1x128xf32>
    %354 = tpu.reciprocal %353 {approx = true} : vector<1x128xf32> -> vector<1x128xf32>
    %355 = arith.mulf %347, %354 : vector<1x128xf32>
    %356 = vector.broadcast %355 : vector<1x128xf32> to vector<8x128xf32>
    %357 = arith.mulf %356, %224 : vector<8x128xf32>
    %358 = arith.mulf %348, %354 : vector<1x128xf32>
    %359 = vector.broadcast %358 : vector<1x128xf32> to vector<8x128xf32>
    %360 = arith.mulf %359, %225 : vector<8x128xf32>
    %361 = arith.addf %357, %360 : vector<8x128xf32>
    %362 = arith.mulf %349, %354 : vector<1x128xf32>
    %363 = vector.broadcast %362 : vector<1x128xf32> to vector<8x128xf32>
    %364 = arith.mulf %363, %226 : vector<8x128xf32>
    %365 = arith.addf %361, %364 : vector<8x128xf32>
    %366 = arith.mulf %350, %354 : vector<1x128xf32>
    %367 = vector.broadcast %366 : vector<1x128xf32> to vector<8x128xf32>
    %368 = arith.mulf %367, %227 : vector<8x128xf32>
    %369 = arith.addf %365, %368 : vector<8x128xf32>
    %370 = tpu.concatenate %300, %323, %346, %369 in 0 : vector<8x128xf32>, vector<8x128xf32>, vector<8x128xf32>, vector<8x128xf32> -> vector<32x128xf32>
    %371 = arith.addf %222, %370 : vector<32x128xf32>
    %372 = math.absf %371 : vector<32x128xf32>
    %373 = math.absf %370 : vector<32x128xf32>
    %374 = arith.addf %372, %373 : vector<32x128xf32>
    %375 = arith.subf %371, %370 : vector<32x128xf32>
    %cst_56 = arith.constant 5.000000e-01 : f32
    %376 = vector.broadcast %cst_56 : f32 to vector<32x128xf32>
    %377 = arith.mulf %375, %376 : vector<32x128xf32>
    %378 = math.cos %377 : vector<32x128xf32>
    %379 = arith.mulf %374, %378 : vector<32x128xf32>
    %cst_57 = arith.constant dense<0.000000e+00> : vector<128xf32>
    %380 = vector.multi_reduction <add>, %379, %cst_57 [0] : vector<32x128xf32> to vector<128xf32>
    %381 = vector.shape_cast %380 : vector<128xf32> to vector<1x128xf32>
    %cst_58 = arith.constant 3.200000e+01 : f32
    %382 = vector.broadcast %cst_58 : f32 to vector<1x128xf32>
    %383 = arith.divf %381, %382 : vector<1x128xf32>
    %384 = vector.broadcast %383 : vector<1x128xf32> to vector<32x128xf32>
    %385 = arith.subf %379, %384 : vector<32x128xf32>
    %386 = arith.mulf %385, %385 : vector<32x128xf32>
    %cst_59 = arith.constant dense<0.000000e+00> : vector<128xf32>
    %387 = vector.multi_reduction <add>, %386, %cst_59 [0] : vector<32x128xf32> to vector<128xf32>
    %388 = vector.shape_cast %387 : vector<128xf32> to vector<1x128xf32>
    %cst_60 = arith.constant 3.200000e+01 : f32
    %389 = vector.broadcast %cst_60 : f32 to vector<1x128xf32>
    %390 = arith.divf %388, %389 : vector<1x128xf32>
    %cst_61 = arith.constant 9.99999974E-6 : f32
    %391 = vector.broadcast %cst_61 : f32 to vector<1x128xf32>
    %392 = arith.addf %390, %391 : vector<1x128xf32>
    %393 = math.rsqrt %392 : vector<1x128xf32>
    %394 = vector.broadcast %393 : vector<1x128xf32> to vector<32x128xf32>
    %395 = arith.mulf %385, %394 : vector<32x128xf32>
    %396 = arith.mulf %395, %45 : vector<32x128xf32>
    %397 = arith.addf %396, %47 : vector<32x128xf32>
    %c0_62 = arith.constant 0 : index
    %c0_63 = arith.constant 0 : index
    %398 = vector.load %arg3[%c0_62, %c0_63] : memref<256x32xbf16, #tpu.memory_space<vmem>>, vector<256x32xbf16>
    %399 = arith.truncf %397 : vector<32x128xf32> to vector<32x128xbf16>
    %cst_64 = arith.constant dense<0.000000e+00> : vector<256x128xf32>
    %400 = tpu.matmul %398, %399, %cst_64 {dimension_numbers = #tpu.dot_dimension_numbers<[1], [0], [0], [1], [0, 0, 1, 1], [], []>} : vector<256x32xbf16>, vector<32x128xbf16>, vector<256x128xf32> -> vector<256x128xf32>
    %c0_65 = arith.constant 0 : index
    %c0_66 = arith.constant 0 : index
    %401 = vector.load %arg4[%c0_65, %c0_66] : memref<256x1xf32, #tpu.memory_space<vmem>>, vector<256x1xf32>
    %402 = vector.broadcast %401 : vector<256x1xf32> to vector<256x128xf32>
    %403 = arith.addf %400, %402 : vector<256x128xf32>
    %404 = arith.truncf %403 : vector<256x128xf32> to vector<256x128xbf16>
    %c0_67 = arith.constant 0 : index
    %c0_68 = arith.constant 0 : index
    %405 = vector.load %arg5[%c0_67, %c0_68] : memref<256x128xbf16, #tpu.memory_space<vmem>>, vector<256x128xbf16>
    tpu.vector_store %arg5[%c0_67, %c0_68], %404 {strides = array<i32>} : memref<256x128xbf16, #tpu.memory_space<vmem>>, vector<256x128xbf16>,
    return
  }
  func.func @transform_0(%arg0: i32) -> (i32, i32) {
    %c0_i32 = arith.constant 0 : i32
    %c0_i32_0 = arith.constant 0 : i32
    return %c0_i32, %arg0 : i32, i32
  }
  func.func @transform_1(%arg0: i32) -> (i32, i32) {
    %c0_i32 = arith.constant 0 : i32
    %c0_i32_0 = arith.constant 0 : i32
    %c0_i32_1 = arith.constant 0 : i32
    return %c0_i32, %c0_i32_0 : i32, i32
  }
  func.func @transform_2(%arg0: i32) -> (i32, i32) {
    %c0_i32 = arith.constant 0 : i32
    %c0_i32_0 = arith.constant 0 : i32
    %c0_i32_1 = arith.constant 0 : i32
    return %c0_i32, %c0_i32_0 : i32, i32
  }
  func.func @transform_3(%arg0: i32) -> (i32, i32) {
    %c0_i32 = arith.constant 0 : i32
    %c0_i32_0 = arith.constant 0 : i32
    %c0_i32_1 = arith.constant 0 : i32
    return %c0_i32, %c0_i32_0 : i32, i32
  }
  func.func @transform_4(%arg0: i32) -> (i32, i32) {
    %c0_i32 = arith.constant 0 : i32
    %c0_i32_0 = arith.constant 0 : i32
    return %c0_i32, %arg0 : i32, i32
  }
}

</mosaic_0001>

<llo_original>
// kernel: tpu_custom_call.1
$region0: #{tpu_custom_call.1}
  #allocation0 [shape = 'u32[]', space=smem, size = 0x4, offset = 0x4, fixed_abs, tag = 'smem constant byte address 0x4 - core index']
  #allocation1 [shape = 'u32[144,128]{1,0:T(1,128)}', space=vmem, size = 0x12000, scoped, tag = 'internal scratch']
  %s0 = inlined_call_operand.vmem [shape: f32[32,128], index: 0, kind: input, shape index: {}]
  %s1 = inlined_call_operand.vmem [shape: f32[32,8], index: 1, kind: input, shape index: {}]
  %s2 = inlined_call_operand.vmem [shape: bf16[256,32], index: 2, kind: input, shape index: {}]
  %s3 = inlined_call_operand.vmem [shape: f32[256,1], index: 3, kind: input, shape index: {}]
  %s4 = inlined_call_operand.hbm [shape: bf16[256,128], index: 4, kind: output, shape index: {}]
  %s5 = sld [smem:[#allocation0]]
  $region26: #{tpu_custom_call.1} parent=0
    _
  %s7 = ssub.s32 1, %s5
  %s8 = scalar_select 0, %s7, %s5
  $region1: #{tpu_custom_call.1} parent=0
    #allocation2 [shape = 'u8[65536]{0}', space=vmem, size = 0x10000, scoped, tag = 'output window, operand 0, single buffered']
    #allocation3 [shape = 's32[1]{0}', space=sflag, size = 0x4, scoped, tag = 'scoped memory for tpu_custom_call.1']
    %9 = vsyncpa [#allocation3], 0
    // Predicated region
    $region2: #{tpu_custom_call.1} parent=1 // pred_check
      _
    $region3: #{tpu_custom_call.1} parent=1 // pred_check_branch
      %11 = sbr.rel (0) target = $region5
    $region4: #{tpu_custom_call.1} parent=1 // pred_region
      _
    $region5: #{tpu_custom_call.1} parent=1 // pred_fallthru
      _
    // Predicated region
    $region6: #{tpu_custom_call.1} parent=1 // pred_check
      _
    $region7: #{tpu_custom_call.1} parent=1 // pred_check_branch
      %13 = sbr.rel (0) target = $region9
    $region8: #{tpu_custom_call.1} parent=1 // pred_region
      _
    $region9: #{tpu_custom_call.1} parent=1 // pred_fallthru
      _
    // Predicated region
    $region10: #{tpu_custom_call.1} parent=1 // pred_check
      _
    $region11: #{tpu_custom_call.1} parent=1 // pred_check_branch
      %15 = sbr.rel (0) target = $region13
    $region12: #{tpu_custom_call.1} parent=1 // pred_region
      _
    $region13: #{tpu_custom_call.1} parent=1 // pred_fallthru
      _
    // Predicated region
    $region14: #{tpu_custom_call.1} parent=1 // pred_check
      _
    $region15: #{tpu_custom_call.1} parent=1 // pred_check_branch
      %17 = sbr.rel (0) target = $region17
    $region16: #{tpu_custom_call.1} parent=1 // pred_region
      _
    $region17: #{tpu_custom_call.1} parent=1 // pred_fallthru
      _
    %v19 = vld [vmem:[%s1] sm:$0xff]
    %v20 = vld [vmem:[%s1 + $0x8] sm:$0xff]
    %v21 = vld [vmem:[%s1 + $0x10] sm:$0xff]
    %v22 = vld [vmem:[%s1 + $0x18] sm:$0xff]
    %v23 = vld [vmem:[%s0] sm:$0xff]
    %v24 = vld [vmem:[%s0 + $0x8] sm:$0xff]
    %v25 = vld [vmem:[%s0 + $0x10] sm:$0xff]
    %v26 = vld [vmem:[%s0 + $0x18] sm:$0xff]
    %v27 = vadd.f32 %v23, %v24
    %v28 = vadd.f32 %v27, %v25
    %v29 = vadd.f32 %v28, %v26
    %v30 = vrot.slane %v29, 4
    %v31 = vadd.f32 %v29, %v30
    %v32 = vrot.slane %v31, 2
    %v33 = vadd.f32 %v31, %v32
    %v34 = vrot.slane %v33, 1
    %v35 = vadd.f32 %v33, %v34
    %v36 = vrcp.pop 32.0
    %v37 = vmul.f32 %v35, %v36
    %v38 = vsub.f32 %v23, %v37
    %v39 = vsub.f32 %v24, %v37
    %v40 = vsub.f32 %v25, %v37
    %v41 = vsub.f32 %v26, %v37
    %v42 = vmul.f32 %v38, %v38
    %v43 = vmul.f32 %v39, %v39
    %v44 = vmul.f32 %v40, %v40
    %v45 = vmul.f32 %v41, %v41
    %v46 = vadd.f32 %v42, %v43
    %v47 = vadd.f32 %v46, %v44
    %v48 = vadd.f32 %v47, %v45
    %v49 = vrot.slane %v48, 4
    %v50 = vadd.f32 %v48, %v49
    %v51 = vrot.slane %v50, 2
    %v52 = vadd.f32 %v50, %v51
    %v53 = vrot.slane %v52, 1
    %v54 = vadd.f32 %v52, %v53
    %v55 = vmul.f32 %v54, %v36
    %v56 = vadd.f32 %v55, 1e-05
    %v57 = vrsqrt.pop %v56
    %v58 = vmul.f32 %v38, %v57
    %v59 = vmul.f32 %v39, %v57
    %v60 = vmul.f32 %v40, %v57
    %v61 = vmul.f32 %v41, %v57
    %63 = vset.pattern.permute.xlu0 2
    %64 = vperm.xlu0 %63, %v19
    %v65 = vpop.permute.xlu0 %64
    %68 = vset.pattern.permute.xlu0 2
    %69 = vperm.xlu0 %68, %v20
    %v70 = vpop.permute.xlu0 %69
    %73 = vset.pattern.permute.xlu0 2
    %74 = vperm.xlu0 %73, %v21
    %v75 = vpop.permute.xlu0 %74
    %78 = vset.pattern.permute.xlu0 2
    %79 = vperm.xlu0 %78, %v22
    %v80 = vpop.permute.xlu0 %79
    %v82 = vmul.f32 %v58, %v65
    %v83 = vmul.f32 %v59, %v70
    %v84 = vmul.f32 %v60, %v75
    %v85 = vmul.f32 %v61, %v80
    %86 = vset.pattern.permute.xlu0 3
    %87 = vperm.xlu0 %86, %v19
    %v88 = vpop.permute.xlu0 %87
    %90 = vset.pattern.permute.xlu0 3
    %91 = vperm.xlu0 %90, %v20
    %v92 = vpop.permute.xlu0 %91
    %94 = vset.pattern.permute.xlu0 3
    %95 = vperm.xlu0 %94, %v21
    %v96 = vpop.permute.xlu0 %95
    %98 = vset.pattern.permute.xlu0 3
    %99 = vperm.xlu0 %98, %v22
    %v100 = vpop.permute.xlu0 %99
    %v102 = vadd.f32 %v82, %v88
    %v103 = vadd.f32 %v83, %v92
    %v104 = vadd.f32 %v84, %v96
    %v105 = vadd.f32 %v85, %v100
    %106 = vset.pattern.permute.xlu0 0
    %107 = vperm.xlu0 %106, %v19
    %v108 = vpop.permute.xlu0 %107
    %110 = vset.pattern.permute.xlu0 0
    %111 = vperm.xlu0 %110, %v20
    %v112 = vpop.permute.xlu0 %111
    %114 = vset.pattern.permute.xlu0 0
    %115 = vperm.xlu0 %114, %v21
    %v116 = vpop.permute.xlu0 %115
    %118 = vset.pattern.permute.xlu0 0
    %119 = vperm.xlu0 %118, %v22
    %v120 = vpop.permute.xlu0 %119
    %v122 = vmul.f32 %v102, %v108
    %v123 = vmul.f32 %v103, %v112
    %v124 = vmul.f32 %v104, %v116
    %v125 = vmul.f32 %v105, %v120
    %v126 = vadd.f32 %v122, %v123
    %v127 = vadd.f32 %v126, %v124
    %v128 = vadd.f32 %v127, %v125
    %v129 = vrot.slane %v128, 4
    %v130 = vadd.f32 %v128, %v129
    %v131 = vrot.slane %v130, 2
    %v132 = vadd.f32 %v130, %v131
    %v133 = vrot.slane %v132, 1
    %v134 = vadd.f32 %v132, %v133
    %v135 = vadd.f32 %v134, %v102
    %v136 = vadd.f32 %v134, %v103
    %v137 = vadd.f32 %v134, %v104
    %v138 = vadd.f32 %v134, %v105
    %v139 = vmul.f32 %v135, %v135
    %v140 = vmul.f32 %v136, %v136
    %v141 = vmul.f32 %v137, %v137
    %v142 = vmul.f32 %v138, %v138
    %v143 = vadd.f32 %v139, %v140
    %v144 = vadd.f32 %v143, %v141
    %v145 = vadd.f32 %v144, %v142
    %v146 = vrot.slane %v145, 4
    %v147 = vadd.f32 %v145, %v146
    %v148 = vrot.slane %v147, 2
    %v149 = vadd.f32 %v147, %v148
    %v150 = vrot.slane %v149, 1
    %v151 = vadd.f32 %v149, %v150
    %v152 = vadd.f32 %v151, 1e-12
    %v153 = vrsqrt.pop %v152
    %v154 = vmul.f32 %v135, %v153
    %v155 = vmul.f32 %v136, %v153
    %v156 = vmul.f32 %v137, %v153
    %v157 = vmul.f32 %v138, %v153
    %158 = vset.pattern.permute.xlu0 1
    %159 = vperm.xlu0 %158, %v19
    %v160 = vpop.permute.xlu0 %159
    %162 = vset.pattern.permute.xlu0 1
    %163 = vperm.xlu0 %162, %v20
    %v164 = vpop.permute.xlu0 %163
    %166 = vset.pattern.permute.xlu0 1
    %167 = vperm.xlu0 %166, %v21
    %v168 = vpop.permute.xlu0 %167
    %170 = vset.pattern.permute.xlu0 1
    %171 = vperm.xlu0 %170, %v22
    %v172 = vpop.permute.xlu0 %171
    %174 = vset.pattern.permute.xlu0 4
    %175 = vperm.xlu0 %174, %v19
    %v176 = vpop.permute.xlu0 %175
    %178 = vset.pattern.permute.xlu0 4
    %179 = vperm.xlu0 %178, %v20
    %v180 = vpop.permute.xlu0 %179
    %182 = vset.pattern.permute.xlu0 4
    %183 = vperm.xlu0 %182, %v21
    %v184 = vpop.permute.xlu0 %183
    %186 = vset.pattern.permute.xlu0 4
    %187 = vperm.xlu0 %186, %v22
    %v188 = vpop.permute.xlu0 %187
    %190 = vset.pattern.permute.xlu0 5
    %191 = vperm.xlu0 %190, %v19
    %v192 = vpop.permute.xlu0 %191
    %194 = vset.pattern.permute.xlu0 5
    %195 = vperm.xlu0 %194, %v20
    %v196 = vpop.permute.xlu0 %195
    %198 = vset.pattern.permute.xlu0 5
    %199 = vperm.xlu0 %198, %v21
    %v200 = vpop.permute.xlu0 %199
    %202 = vset.pattern.permute.xlu0 5
    %203 = vperm.xlu0 %202, %v22
    %v204 = vpop.permute.xlu0 %203
    %v206 = vmul.f32 %v154, %v160
    %v207 = vmul.f32 %v155, %v164
    %v208 = vmul.f32 %v156, %v168
    %v209 = vmul.f32 %v157, %v172
    %v210 = vmul.f32 %v206, %v206
    %v211 = vrot.slane %v210, 4
    %v212 = vadd.f32 %v210, %v211
    %v213 = vrot.slane %v212, 2
    %v214 = vadd.f32 %v212, %v213
    %v215 = vrot.slane %v214, 1
    %v216 = vadd.f32 %v214, %v215
    %v217 = vmul.f32 %v216, 0.35355338
    %v218 = vmul.f32 %v206, %v207
    %v219 = vrot.slane %v218, 4
    %v220 = vadd.f32 %v218, %v219
    %v221 = vrot.slane %v220, 2
    %v222 = vadd.f32 %v220, %v221
    %v223 = vrot.slane %v222, 1
    %v224 = vadd.f32 %v222, %v223
    %v225 = vmul.f32 %v224, 0.35355338
    %v226 = vmul.f32 %v206, %v208
    %v227 = vrot.slane %v226, 4
    %v228 = vadd.f32 %v226, %v227
    %v229 = vrot.slane %v228, 2
    %v230 = vadd.f32 %v228, %v229
    %v231 = vrot.slane %v230, 1
    %v232 = vadd.f32 %v230, %v231
    %v233 = vmul.f32 %v232, 0.35355338
    %v234 = vmul.f32 %v206, %v209
    %v235 = vrot.slane %v234, 4
    %v236 = vadd.f32 %v234, %v235
    %v237 = vrot.slane %v236, 2
    %v238 = vadd.f32 %v236, %v237
    %v239 = vrot.slane %v238, 1
    %v240 = vadd.f32 %v238, %v239
    %v241 = vmul.f32 %v240, 0.35355338
    %v242 = vmul.f32 %v207, %v207
    %v243 = vrot.slane %v242, 4
    %v244 = vadd.f32 %v242, %v243
    %v245 = vrot.slane %v244, 2
    %v246 = vadd.f32 %v244, %v245
    %v247 = vrot.slane %v246, 1
    %v248 = vadd.f32 %v246, %v247
    %v249 = vmul.f32 %v248, 0.35355338
    %v250 = vmul.f32 %v207, %v208
    %v251 = vrot.slane %v250, 4
    %v252 = vadd.f32 %v250, %v251
    %v253 = vrot.slane %v252, 2
    %v254 = vadd.f32 %v252, %v253
    %v255 = vrot.slane %v254, 1
    %v256 = vadd.f32 %v254, %v255
    %v257 = vmul.f32 %v256, 0.35355338
    %v258 = vmul.f32 %v207, %v209
    %v259 = vrot.slane %v258, 4
    %v260 = vadd.f32 %v258, %v259
    %v261 = vrot.slane %v260, 2
    %v262 = vadd.f32 %v260, %v261
    %v263 = vrot.slane %v262, 1
    %v264 = vadd.f32 %v262, %v263
    %v265 = vmul.f32 %v264, 0.35355338
    %v266 = vmul.f32 %v208, %v208
    %v267 = vrot.slane %v266, 4
    %v268 = vadd.f32 %v266, %v267
    %v269 = vrot.slane %v268, 2
    %v270 = vadd.f32 %v268, %v269
    %v271 = vrot.slane %v270, 1
    %v272 = vadd.f32 %v270, %v271
    %v273 = vmul.f32 %v272, 0.35355338
    %v274 = vmul.f32 %v208, %v209
    %v275 = vrot.slane %v274, 4
    %v276 = vadd.f32 %v274, %v275
    %v277 = vrot.slane %v276, 2
    %v278 = vadd.f32 %v276, %v277
    %v279 = vrot.slane %v278, 1
    %v280 = vadd.f32 %v278, %v279
    %v281 = vmul.f32 %v280, 0.35355338
    %v282 = vmul.f32 %v209, %v209
    %v283 = vrot.slane %v282, 4
    %v284 = vadd.f32 %v282, %v283
    %v285 = vrot.slane %v284, 2
    %v286 = vadd.f32 %v284, %v285
    %v287 = vrot.slane %v286, 1
    %v288 = vadd.f32 %v286, %v287
    %v289 = vmul.f32 %v288, 0.35355338
    %v290 = vmul.f32 %v217, 1.442695
    %v291 = vpow.pop %v290
    %v292 = vmul.f32 %v225, 1.442695
    %v293 = vpow.pop %v292
    %v294 = vmul.f32 %v233, 1.442695
    %v295 = vpow.pop %v294
    %v296 = vmul.f32 %v241, 1.442695
    %v297 = vpow.pop %v296
    %v298 = vadd.f32 %v291, %v293
    %v299 = vadd.f32 %v298, %v295
    %v300 = vadd.f32 %v299, %v297
    %v301 = vrcp.pop %v300
    %v302 = vmul.f32 %v291, %v301
    %v303 = vmul.f32 %v302, %v206
    %v304 = vmul.f32 %v293, %v301
    %v305 = vmul.f32 %v304, %v207
    %v306 = vadd.f32 %v303, %v305
    %v307 = vmul.f32 %v295, %v301
    %v308 = vmul.f32 %v307, %v208
    %v309 = vadd.f32 %v306, %v308
    %v310 = vmul.f32 %v297, %v301
    %v311 = vmul.f32 %v310, %v209
    %v312 = vadd.f32 %v309, %v311
    %v313 = vmul.f32 %v249, 1.442695
    %v314 = vpow.pop %v313
    %v315 = vmul.f32 %v257, 1.442695
    %v316 = vpow.pop %v315
    %v317 = vmul.f32 %v265, 1.442695
    %v318 = vpow.pop %v317
    %v319 = vadd.f32 %v293, %v314
    %v320 = vadd.f32 %v319, %v316
    %v321 = vadd.f32 %v320, %v318
    %v322 = vrcp.pop %v321
    %v323 = vmul.f32 %v293, %v322
    %v324 = vmul.f32 %v323, %v206
    %v325 = vmul.f32 %v314, %v322
    %v326 = vmul.f32 %v325, %v207
    %v327 = vadd.f32 %v324, %v326
    %v328 = vmul.f32 %v316, %v322
    %v329 = vmul.f32 %v328, %v208
    %v330 = vadd.f32 %v327, %v329
    %v331 = vmul.f32 %v318, %v322
    %v332 = vmul.f32 %v331, %v209
    %v333 = vadd.f32 %v330, %v332
    %v334 = vmul.f32 %v273, 1.442695
    %v335 = vpow.pop %v334
    %v336 = vmul.f32 %v281, 1.442695
    %v337 = vpow.pop %v336
    %v338 = vadd.f32 %v295, %v316
    %v339 = vadd.f32 %v338, %v335
    %v340 = vadd.f32 %v339, %v337
    %v341 = vrcp.pop %v340
    %v342 = vmul.f32 %v295, %v341
    %v343 = vmul.f32 %v342, %v206
    %v344 = vmul.f32 %v316, %v341
    %v345 = vmul.f32 %v344, %v207
    %v346 = vadd.f32 %v343, %v345
    %v347 = vmul.f32 %v335, %v341
    %v348 = vmul.f32 %v347, %v208
    %v349 = vadd.f32 %v346, %v348
    %v350 = vmul.f32 %v337, %v341
    %v351 = vmul.f32 %v350, %v209
    %v352 = vadd.f32 %v349, %v351
    %v353 = vmul.f32 %v289, 1.442695
    %v354 = vpow.pop %v353
    %v355 = vadd.f32 %v297, %v318
    %v356 = vadd.f32 %v355, %v337
    %v357 = vadd.f32 %v356, %v354
    %v358 = vrcp.pop %v357
    %v359 = vmul.f32 %v297, %v358
    %v360 = vmul.f32 %v359, %v206
    %v361 = vmul.f32 %v318, %v358
    %v362 = vmul.f32 %v361, %v207
    %v363 = vadd.f32 %v360, %v362
    %v364 = vmul.f32 %v337, %v358
    %v365 = vmul.f32 %v364, %v208
    %v366 = vadd.f32 %v363, %v365
    %v367 = vmul.f32 %v354, %v358
    %v368 = vmul.f32 %v367, %v209
    %v369 = vadd.f32 %v366, %v368
    %v370 = vadd.f32 %v154, %v312
    %v371 = vadd.f32 %v155, %v333
    %v372 = vadd.f32 %v156, %v352
    %v373 = vadd.f32 %v157, %v369
    %v374 = vand.u32 2147483647, %v370
    %v375 = vand.u32 2147483647, %v371
    %v376 = vand.u32 2147483647, %v372
    %v377 = vand.u32 2147483647, %v373
    %v378 = vand.u32 2147483647, %v312
    %v379 = vand.u32 2147483647, %v333
    %v380 = vand.u32 2147483647, %v352
    %v381 = vand.u32 2147483647, %v369
    %v382 = vadd.f32 %v374, %v378
    %v383 = vadd.f32 %v375, %v379
    %v384 = vadd.f32 %v376, %v380
    %v385 = vadd.f32 %v377, %v381
    %v386 = vsub.f32 %v370, %v312
    %v387 = vsub.f32 %v371, %v333
    %v388 = vsub.f32 %v372, %v352
    %v389 = vsub.f32 %v373, %v369
    %v390 = vmul.f32 %v386, 0.5
    %v391 = vmul.f32 %v387, 0.5
    %v392 = vmul.f32 %v388, 0.5
    %v393 = vmul.f32 %v389, 0.5
    %v394 = vand.u32 2147483647, %v390
    %vm395 = vcmp.le.f32.partialorder %v394, 0.7853982
    %vm396 = vcmp.lt.s32.totalorder %v390, 0
    %v397 = vand.u32 %v390, 2139095040
    %v398 = vshrl.u32 %v397, 23
    %v399 = vsub.s32 %v398, 127
    %v400 = vand.u32 2147483647, %v390
    %v401 = vand.u32 %v400, 8388607
    %v402 = vor.u32 %v401, 8388608
    %v403 = vsub.s32 0, %v402
    %v404 = vadd.s32 %v399, 1
    %vm405 = vcmp.gt.s32.totalorder %v404, 0
    %v406 = vsel %vm405, %v404, 0
    %v407 = vshrl.u32 %v406, 5
    %v408 = vand.u32 %v406, 31
    %v409 = vsub.s32 32, %v408
    %v410 = vshrl.u32 683565275, %v409
    %v411 = vshll.u32 683565275, %v408
    %v412 = vshrl.u32 2475754826, %v409
    %v413 = vor.u32 %v411, %v412
    %v414 = vshll.u32 2475754826, %v408
    %v415 = vshrl.u32 2131351028, %v409
    %v416 = vor.u32 %v414, %v415
    %v417 = vshll.u32 2131351028, %v408
    %v418 = vshrl.u32 2102212464, %v409
    %v419 = vor.u32 %v417, %v418
    %v420 = vshll.u32 2102212464, %v408
    %v421 = vshrl.u32 920167782, %v409
    %v422 = vor.u32 %v420, %v421
    %v423 = vshll.u32 920167782, %v408
    %v424 = vshrl.u32 1326507024, %v409
    %v425 = vor.u32 %v423, %v424
    %vm426 = vcmp.lt.s32.totalorder %v407, 1
    %vm427 = vcmp.lt.s32.totalorder %v407, 2
    %vm428 = vcmp.lt.s32.totalorder %v407, 3
    %vm429 = vcmp.lt.s32.totalorder %v407, 4
    %v430 = vsel %vm426, %v410, %v413
    %v431 = vsel %vm429, %v419, 2102212464
    %v432 = vsel %vm428, %v416, %v431
    %v433 = vsel %vm427, %v430, %v432
    %v434 = vsel %vm426, %v413, %v416
    %v435 = vsel %vm429, %v422, 920167782
    %v436 = vsel %vm428, %v419, %v435
    %v437 = vsel %vm427, %v434, %v436
    %v438 = vsel %vm426, %v416, %v419
    %v439 = vsel %vm429, %v425, 1326507024
    %v440 = vsel %vm428, %v422, %v439
    %v441 = vsel %vm427, %v438, %v440
    %v442 = vshll.u32 %v402, 8
    %v443 = vmul.u32.u64.compose %v442, %v441
    %v444 = vextract.low.u32 %v443
    %v445 = vextract.high.u32 %v443
    %v446 = vmul.u32.u64.compose %v442, %v437
    %v447 = vextract.low.u32 %v446
    %v448 = vextract.high.u32 %v446
    %v449 = vmul.u32 %v442, %v433
    %v450 = vadd.s32 %v445, %v447
    %vm451 = vc.u32 %v445, %v447
    %v452 = vadd.s32 %v448, 1
    %v453 = vsel %vm451, %v452, %v448
    %v454 = vadd.s32 %v449, %v453
    %v455 = vadd.s32 %v454, 536870912
    %v456 = vshrl.u32 %v455, 30
    %v457 = vshll.u32 %v456, 30
    %v458 = vsub.s32 %v454, %v457
    %vm459 = vcmp.lt.s32.totalorder %v458, 0
    %v460 = vsub.s32 0, %v458
    %v461 = vsel %vm459, %v460, %v458
    %v462 = vclz %v461
    %v463 = vsub.s32 %v462, 2
    %vm464 = vcmp.gt.s32.totalorder 0, %v463
    %v465 = vsel %vm464, 0, %v463
    %v466 = vsub.s32 32, %v465
    %v467 = vshll.u32 %v458, %v465
    %v468 = vshrl.u32 %v450, %v466
    %v469 = vor.u32 %v467, %v468
    %v470 = vsub.s32 4294967266, %v465
    %v471 = vadd.s32 %v470, 127
    %v472 = vshll.u32 %v471, 23
    %v473 = vor.u32 4788187, %v472
    %v474 = vand.u32 2147483647, %v473
    %v476 = vcvt.s32.f32 %v469
    %v477 = vmul.f32 %v476, %v474
    %v478 = vxor.u32 %v477, 2147483648
    %v479 = vsel %vm396, %v478, %v477
    %v480 = vsub.s32 4, %v456
    %v481 = vsel %vm396, %v480, %v456
    %v482 = vsel %vm395, %v390, %v479
    %v483 = vsel %vm395, 0, %v481
    %v484 = vcosq.f32.pop %v482
    %v485 = vsinq.f32.pop %v482
    %vm486 = vweird.f32 %v390
    %v487 = vand.u32 %v483, 3
    %vm488 = vcmp.lt.s32.totalorder %v487, 2
    %vm489 = vcmp.eq.s32.totalorder %v487, 0
    %v490 = vxor.u32 %v485, 2147483648
    %v491 = vsel %vm489, %v484, %v490
    %vm492 = vcmp.eq.s32.totalorder %v487, 2
    %v493 = vxor.u32 %v484, 2147483648
    %v494 = vsel %vm492, %v493, %v485
    %v495 = vsel %vm488, %v491, %v494
    %v496 = vsel %vm486, nan, %v495
    %v497 = vand.u32 2147483647, %v391
    %vm498 = vcmp.le.f32.partialorder %v497, 0.7853982
    %vm499 = vcmp.lt.s32.totalorder %v391, 0
    %v500 = vand.u32 %v391, 2139095040
    %v501 = vshrl.u32 %v500, 23
    %v502 = vsub.s32 %v501, 127
    %v503 = vand.u32 2147483647, %v391
    %v504 = vand.u32 %v503, 8388607
    %v505 = vor.u32 %v504, 8388608
    %v506 = vsub.s32 0, %v505
    %v507 = vadd.s32 %v502, 1
    %vm508 = vcmp.gt.s32.totalorder %v507, 0
    %v509 = vsel %vm508, %v507, 0
    %v510 = vshrl.u32 %v509, 5
    %v511 = vand.u32 %v509, 31
    %v512 = vsub.s32 32, %v511
    %v513 = vshrl.u32 683565275, %v512
    %v514 = vshll.u32 683565275, %v511
    %v515 = vshrl.u32 2475754826, %v512
    %v516 = vor.u32 %v514, %v515
    %v517 = vshll.u32 2475754826, %v511
    %v518 = vshrl.u32 2131351028, %v512
    %v519 = vor.u32 %v517, %v518
    %v520 = vshll.u32 2131351028, %v511
    %v521 = vshrl.u32 2102212464, %v512
    %v522 = vor.u32 %v520, %v521
    %v523 = vshll.u32 2102212464, %v511
    %v524 = vshrl.u32 920167782, %v512
    %v525 = vor.u32 %v523, %v524
    %v526 = vshll.u32 920167782, %v511
    %v527 = vshrl.u32 1326507024, %v512
    %v528 = vor.u32 %v526, %v527
    %vm529 = vcmp.lt.s32.totalorder %v510, 1
    %vm530 = vcmp.lt.s32.totalorder %v510, 2
    %vm531 = vcmp.lt.s32.totalorder %v510, 3
    %vm532 = vcmp.lt.s32.totalorder %v510, 4
    %v533 = vsel %vm529, %v513, %v516
    %v534 = vsel %vm532, %v522, 2102212464
    %v535 = vsel %vm531, %v519, %v534
    %v536 = vsel %vm530, %v533, %v535
    %v537 = vsel %vm529, %v516, %v519
    %v538 = vsel %vm532, %v525, 920167782
    %v539 = vsel %vm531, %v522, %v538
    %v540 = vsel %vm530, %v537, %v539
    %v541 = vsel %vm529, %v519, %v522
    %v542 = vsel %vm532, %v528, 1326507024
    %v543 = vsel %vm531, %v525, %v542
    %v544 = vsel %vm530, %v541, %v543
    %v545 = vshll.u32 %v505, 8
    %v546 = vmul.u32.u64.compose %v545, %v544
    %v547 = vextract.low.u32 %v546
    %v548 = vextract.high.u32 %v546
    %v549 = vmul.u32.u64.compose %v545, %v540
    %v550 = vextract.low.u32 %v549
    %v551 = vextract.high.u32 %v549
    %v552 = vmul.u32 %v545, %v536
    %v553 = vadd.s32 %v548, %v550
    %vm554 = vc.u32 %v548, %v550
    %v555 = vadd.s32 %v551, 1
    %v556 = vsel %vm554, %v555, %v551
    %v557 = vadd.s32 %v552, %v556
    %v558 = vadd.s32 %v557, 536870912
    %v559 = vshrl.u32 %v558, 30
    %v560 = vshll.u32 %v559, 30
    %v561 = vsub.s32 %v557, %v560
    %vm562 = vcmp.lt.s32.totalorder %v561, 0
    %v563 = vsub.s32 0, %v561
    %v564 = vsel %vm562, %v563, %v561
    %v565 = vclz %v564
    %v566 = vsub.s32 %v565, 2
    %vm567 = vcmp.gt.s32.totalorder 0, %v566
    %v568 = vsel %vm567, 0, %v566
    %v569 = vsub.s32 32, %v568
    %v570 = vshll.u32 %v561, %v568
    %v571 = vshrl.u32 %v553, %v569
    %v572 = vor.u32 %v570, %v571
    %v573 = vsub.s32 4294967266, %v568
    %v574 = vadd.s32 %v573, 127
    %v575 = vshll.u32 %v574, 23
    %v576 = vor.u32 4788187, %v575
    %v577 = vand.u32 2147483647, %v576
    %v579 = vcvt.s32.f32 %v572
    %v580 = vmul.f32 %v579, %v577
    %v581 = vxor.u32 %v580, 2147483648
    %v582 = vsel %vm499, %v581, %v580
    %v583 = vsub.s32 4, %v559
    %v584 = vsel %vm499, %v583, %v559
    %v585 = vsel %vm498, %v391, %v582
    %v586 = vsel %vm498, 0, %v584
    %v587 = vcosq.f32.pop %v585
    %v588 = vsinq.f32.pop %v585
    %vm589 = vweird.f32 %v391
    %v590 = vand.u32 %v586, 3
    %vm591 = vcmp.lt.s32.totalorder %v590, 2
    %vm592 = vcmp.eq.s32.totalorder %v590, 0
    %v593 = vxor.u32 %v588, 2147483648
    %v594 = vsel %vm592, %v587, %v593
    %vm595 = vcmp.eq.s32.totalorder %v590, 2
    %v596 = vxor.u32 %v587, 2147483648
    %v597 = vsel %vm595, %v596, %v588
    %v598 = vsel %vm591, %v594, %v597
    %v599 = vsel %vm589, nan, %v598
    %v600 = vand.u32 2147483647, %v392
    %vm601 = vcmp.le.f32.partialorder %v600, 0.7853982
    %vm602 = vcmp.lt.s32.totalorder %v392, 0
    %v603 = vand.u32 %v392, 2139095040
    %v604 = vshrl.u32 %v603, 23
    %v605 = vsub.s32 %v604, 127
    %v606 = vand.u32 2147483647, %v392
    %v607 = vand.u32 %v606, 8388607
    %v608 = vor.u32 %v607, 8388608
    %v609 = vsub.s32 0, %v608
    %v610 = vadd.s32 %v605, 1
    %vm611 = vcmp.gt.s32.totalorder %v610, 0
    %v612 = vsel %vm611, %v610, 0
    %v613 = vshrl.u32 %v612, 5
    %v614 = vand.u32 %v612, 31
    %v615 = vsub.s32 32, %v614
    %v616 = vshrl.u32 683565275, %v615
    %v617 = vshll.u32 683565275, %v614
    %v618 = vshrl.u32 2475754826, %v615
    %v619 = vor.u32 %v617, %v618
    %v620 = vshll.u32 2475754826, %v614
    %v621 = vshrl.u32 2131351028, %v615
    %v622 = vor.u32 %v620, %v621
    %v623 = vshll.u32 2131351028, %v614
    %v624 = vshrl.u32 2102212464, %v615
    %v625 = vor.u32 %v623, %v624
    %v626 = vshll.u32 2102212464, %v614
    %v627 = vshrl.u32 920167782, %v615
    %v628 = vor.u32 %v626, %v627
    %v629 = vshll.u32 920167782, %v614
    %v630 = vshrl.u32 1326507024, %v615
    %v631 = vor.u32 %v629, %v630
    %vm632 = vcmp.lt.s32.totalorder %v613, 1
    %vm633 = vcmp.lt.s32.totalorder %v613, 2
    %vm634 = vcmp.lt.s32.totalorder %v613, 3
    %vm635 = vcmp.lt.s32.totalorder %v613, 4
    %v636 = vsel %vm632, %v616, %v619
    %v637 = vsel %vm635, %v625, 2102212464
    %v638 = vsel %vm634, %v622, %v637
    %v639 = vsel %vm633, %v636, %v638
    %v640 = vsel %vm632, %v619, %v622
    %v641 = vsel %vm635, %v628, 920167782
    %v642 = vsel %vm634, %v625, %v641
    %v643 = vsel %vm633, %v640, %v642
    %v644 = vsel %vm632, %v622, %v625
    %v645 = vsel %vm635, %v631, 1326507024
    %v646 = vsel %vm634, %v628, %v645
    %v647 = vsel %vm633, %v644, %v646
    %v648 = vshll.u32 %v608, 8
    %v649 = vmul.u32.u64.compose %v648, %v647
    %v650 = vextract.low.u32 %v649
    %v651 = vextract.high.u32 %v649
    %v652 = vmul.u32.u64.compose %v648, %v643
    %v653 = vextract.low.u32 %v652
    %v654 = vextract.high.u32 %v652
    %v655 = vmul.u32 %v648, %v639
    %v656 = vadd.s32 %v651, %v653
    %vm657 = vc.u32 %v651, %v653
    %v658 = vadd.s32 %v654, 1
    %v659 = vsel %vm657, %v658, %v654
    %v660 = vadd.s32 %v655, %v659
    %v661 = vadd.s32 %v660, 536870912
    %v662 = vshrl.u32 %v661, 30
    %v663 = vshll.u32 %v662, 30
    %v664 = vsub.s32 %v660, %v663
    %vm665 = vcmp.lt.s32.totalorder %v664, 0
    %v666 = vsub.s32 0, %v664
    %v667 = vsel %vm665, %v666, %v664
    %v668 = vclz %v667
    %v669 = vsub.s32 %v668, 2
    %vm670 = vcmp.gt.s32.totalorder 0, %v669
    %v671 = vsel %vm670, 0, %v669
    %v672 = vsub.s32 32, %v671
    %v673 = vshll.u32 %v664, %v671
    %v674 = vshrl.u32 %v656, %v672
    %v675 = vor.u32 %v673, %v674
    %v676 = vsub.s32 4294967266, %v671
    %v677 = vadd.s32 %v676, 127
    %v678 = vshll.u32 %v677, 23
    %v679 = vor.u32 4788187, %v678
    %v680 = vand.u32 2147483647, %v679
    %v682 = vcvt.s32.f32 %v675
    %v683 = vmul.f32 %v682, %v680
    %v684 = vxor.u32 %v683, 2147483648
    %v685 = vsel %vm602, %v684, %v683
    %v686 = vsub.s32 4, %v662
    %v687 = vsel %vm602, %v686, %v662
    %v688 = vsel %vm601, %v392, %v685
    %v689 = vsel %vm601, 0, %v687
    %v690 = vcosq.f32.pop %v688
    %v691 = vsinq.f32.pop %v688
    %vm692 = vweird.f32 %v392
    %v693 = vand.u32 %v689, 3
    %vm694 = vcmp.lt.s32.totalorder %v693, 2
    %vm695 = vcmp.eq.s32.totalorder %v693, 0
    %v696 = vxor.u32 %v691, 2147483648
    %v697 = vsel %vm695, %v690, %v696
    %vm698 = vcmp.eq.s32.totalorder %v693, 2
    %v699 = vxor.u32 %v690, 2147483648
    %v700 = vsel %vm698, %v699, %v691
    %v701 = vsel %vm694, %v697, %v700
    %v702 = vsel %vm692, nan, %v701
    %v703 = vand.u32 2147483647, %v393
    %vm704 = vcmp.le.f32.partialorder %v703, 0.7853982
    %vm705 = vcmp.lt.s32.totalorder %v393, 0
    %v706 = vand.u32 %v393, 2139095040
    %v707 = vshrl.u32 %v706, 23
    %v708 = vsub.s32 %v707, 127
    %v709 = vand.u32 2147483647, %v393
    %v710 = vand.u32 %v709, 8388607
    %v711 = vor.u32 %v710, 8388608
    %v712 = vsub.s32 0, %v711
    %v713 = vadd.s32 %v708, 1
    %vm714 = vcmp.gt.s32.totalorder %v713, 0
    %v715 = vsel %vm714, %v713, 0
    %v716 = vshrl.u32 %v715, 5
    %v717 = vand.u32 %v715, 31
    %v718 = vsub.s32 32, %v717
    %v719 = vshrl.u32 683565275, %v718
    %v720 = vshll.u32 683565275, %v717
    %v721 = vshrl.u32 2475754826, %v718
    %v722 = vor.u32 %v720, %v721
    %v723 = vshll.u32 2475754826, %v717
    %v724 = vshrl.u32 2131351028, %v718
    %v725 = vor.u32 %v723, %v724
    %v726 = vshll.u32 2131351028, %v717
    %v727 = vshrl.u32 2102212464, %v718
    %v728 = vor.u32 %v726, %v727
    %v729 = vshll.u32 2102212464, %v717
    %v730 = vshrl.u32 920167782, %v718
    %v731 = vor.u32 %v729, %v730
    %v732 = vshll.u32 920167782, %v717
    %v733 = vshrl.u32 1326507024, %v718
    %v734 = vor.u32 %v732, %v733
    %vm735 = vcmp.lt.s32.totalorder %v716, 1
    %vm736 = vcmp.lt.s32.totalorder %v716, 2
    %vm737 = vcmp.lt.s32.totalorder %v716, 3
    %vm738 = vcmp.lt.s32.totalorder %v716, 4
    %v739 = vsel %vm735, %v719, %v722
    %v740 = vsel %vm738, %v728, 2102212464
    %v741 = vsel %vm737, %v725, %v740
    %v742 = vsel %vm736, %v739, %v741
    %v743 = vsel %vm735, %v722, %v725
    %v744 = vsel %vm738, %v731, 920167782
    %v745 = vsel %vm737, %v728, %v744
    %v746 = vsel %vm736, %v743, %v745
    %v747 = vsel %vm735, %v725, %v728
    %v748 = vsel %vm738, %v734, 1326507024
    %v749 = vsel %vm737, %v731, %v748
    %v750 = vsel %vm736, %v747, %v749
    %v751 = vshll.u32 %v711, 8
    %v752 = vmul.u32.u64.compose %v751, %v750
    %v753 = vextract.low.u32 %v752
    %v754 = vextract.high.u32 %v752
    %v755 = vmul.u32.u64.compose %v751, %v746
    %v756 = vextract.low.u32 %v755
    %v757 = vextract.high.u32 %v755
    %v758 = vmul.u32 %v751, %v742
    %v759 = vadd.s32 %v754, %v756
    %vm760 = vc.u32 %v754, %v756
    %v761 = vadd.s32 %v757, 1
    %v762 = vsel %vm760, %v761, %v757
    %v763 = vadd.s32 %v758, %v762
    %v764 = vadd.s32 %v763, 536870912
    %v765 = vshrl.u32 %v764, 30
    %v766 = vshll.u32 %v765, 30
    %v767 = vsub.s32 %v763, %v766
    %vm768 = vcmp.lt.s32.totalorder %v767, 0
    %v769 = vsub.s32 0, %v767
    %v770 = vsel %vm768, %v769, %v767
    %v771 = vclz %v770
    %v772 = vsub.s32 %v771, 2
    %vm773 = vcmp.gt.s32.totalorder 0, %v772
    %v774 = vsel %vm773, 0, %v772
    %v775 = vsub.s32 32, %v774
    %v776 = vshll.u32 %v767, %v774
    %v777 = vshrl.u32 %v759, %v775
    %v778 = vor.u32 %v776, %v777
    %v779 = vsub.s32 4294967266, %v774
    %v780 = vadd.s32 %v779, 127
    %v781 = vshll.u32 %v780, 23
    %v782 = vor.u32 4788187, %v781
    %v783 = vand.u32 2147483647, %v782
    %v785 = vcvt.s32.f32 %v778
    %v786 = vmul.f32 %v785, %v783
    %v787 = vxor.u32 %v786, 2147483648
    %v788 = vsel %vm705, %v787, %v786
    %v789 = vsub.s32 4, %v765
    %v790 = vsel %vm705, %v789, %v765
    %v791 = vsel %vm704, %v393, %v788
    %v792 = vsel %vm704, 0, %v790
    %v793 = vcosq.f32.pop %v791
    %v794 = vsinq.f32.pop %v791
    %vm795 = vweird.f32 %v393
    %v796 = vand.u32 %v792, 3
    %vm797 = vcmp.lt.s32.totalorder %v796, 2
    %vm798 = vcmp.eq.s32.totalorder %v796, 0
    %v799 = vxor.u32 %v794, 2147483648
    %v800 = vsel %vm798, %v793, %v799
    %vm801 = vcmp.eq.s32.totalorder %v796, 2
    %v802 = vxor.u32 %v793, 2147483648
    %v803 = vsel %vm801, %v802, %v794
    %v804 = vsel %vm797, %v800, %v803
    %v805 = vsel %vm795, nan, %v804
    %v806 = vmul.f32 %v382, %v496
    %v807 = vmul.f32 %v383, %v599
    %v808 = vmul.f32 %v384, %v702
    %v809 = vmul.f32 %v385, %v805
    %v810 = vadd.f32 %v806, %v807
    %v811 = vadd.f32 %v810, %v808
    %v812 = vadd.f32 %v811, %v809
    %v813 = vrot.slane %v812, 4
    %v814 = vadd.f32 %v812, %v813
    %v815 = vrot.slane %v814, 2
    %v816 = vadd.f32 %v814, %v815
    %v817 = vrot.slane %v816, 1
    %v818 = vadd.f32 %v816, %v817
    %v819 = vmul.f32 %v818, %v36
    %v820 = vsub.f32 %v806, %v819
    %v821 = vsub.f32 %v807, %v819
    %v822 = vsub.f32 %v808, %v819
    %v823 = vsub.f32 %v809, %v819
    %v824 = vmul.f32 %v820, %v820
    %v825 = vmul.f32 %v821, %v821
    %v826 = vmul.f32 %v822, %v822
    %v827 = vmul.f32 %v823, %v823
    %v828 = vadd.f32 %v824, %v825
    %v829 = vadd.f32 %v828, %v826
    %v830 = vadd.f32 %v829, %v827
    %v831 = vrot.slane %v830, 4
    %v832 = vadd.f32 %v830, %v831
    %v833 = vrot.slane %v832, 2
    %v834 = vadd.f32 %v832, %v833
    %v835 = vrot.slane %v834, 1
    %v836 = vadd.f32 %v834, %v835
    %v837 = vmul.f32 %v836, %v36
    %v838 = vadd.f32 %v837, 1e-05
    %v839 = vrsqrt.pop %v838
    %v840 = vmul.f32 %v820, %v839
    %v841 = vmul.f32 %v821, %v839
    %v842 = vmul.f32 %v822, %v839
    %v843 = vmul.f32 %v823, %v839
    %v844 = vmul.f32 %v840, %v176
    %v845 = vmul.f32 %v841, %v180
    %v846 = vmul.f32 %v842, %v184
    %v847 = vmul.f32 %v843, %v188
    %v848 = vadd.f32 %v844, %v192
    %v849 = vadd.f32 %v845, %v196
    %v850 = vadd.f32 %v846, %v200
    %v851 = vadd.f32 %v847, %v204
    %v852 = vmul.f32 %v848, %v160
    %v853 = vmul.f32 %v849, %v164
    %v854 = vmul.f32 %v850, %v168
    %v855 = vmul.f32 %v851, %v172
    %v856 = vmul.f32 %v852, %v852
    %v857 = vrot.slane %v856, 4
    %v858 = vadd.f32 %v856, %v857
    %v859 = vrot.slane %v858, 2
    %v860 = vadd.f32 %v858, %v859
    %v861 = vrot.slane %v860, 1
    %v862 = vadd.f32 %v860, %v861
    %v863 = vmul.f32 %v862, 0.35355338
    %v864 = vmul.f32 %v852, %v853
    %v865 = vrot.slane %v864, 4
    %v866 = vadd.f32 %v864, %v865
    %v867 = vrot.slane %v866, 2
    %v868 = vadd.f32 %v866, %v867
    %v869 = vrot.slane %v868, 1
    %v870 = vadd.f32 %v868, %v869
    %v871 = vmul.f32 %v870, 0.35355338
    %v872 = vmul.f32 %v852, %v854
    %v873 = vrot.slane %v872, 4
    %v874 = vadd.f32 %v872, %v873
    %v875 = vrot.slane %v874, 2
    %v876 = vadd.f32 %v874, %v875
    %v877 = vrot.slane %v876, 1
    %v878 = vadd.f32 %v876, %v877
    %v879 = vmul.f32 %v878, 0.35355338
    %v880 = vmul.f32 %v852, %v855
    %v881 = vrot.slane %v880, 4
    %v882 = vadd.f32 %v880, %v881
    %v883 = vrot.slane %v882, 2
    %v884 = vadd.f32 %v882, %v883
    %v885 = vrot.slane %v884, 1
    %v886 = vadd.f32 %v884, %v885
    %v887 = vmul.f32 %v886, 0.35355338
    %v888 = vmul.f32 %v853, %v853
    %v889 = vrot.slane %v888, 4
    %v890 = vadd.f32 %v888, %v889
    %v891 = vrot.slane %v890, 2
    %v892 = vadd.f32 %v890, %v891
    %v893 = vrot.slane %v892, 1
    %v894 = vadd.f32 %v892, %v893
    %v895 = vmul.f32 %v894, 0.35355338
    %v896 = vmul.f32 %v853, %v854
    %v897 = vrot.slane %v896, 4
    %v898 = vadd.f32 %v896, %v897
    %v899 = vrot.slane %v898, 2
    %v900 = vadd.f32 %v898, %v899
    %v901 = vrot.slane %v900, 1
    %v902 = vadd.f32 %v900, %v901
    %v903 = vmul.f32 %v902, 0.35355338
    %v904 = vmul.f32 %v853, %v855
    %v905 = vrot.slane %v904, 4
    %v906 = vadd.f32 %v904, %v905
    %v907 = vrot.slane %v906, 2
    %v908 = vadd.f32 %v906, %v907
    %v909 = vrot.slane %v908, 1
    %v910 = vadd.f32 %v908, %v909
    %v911 = vmul.f32 %v910, 0.35355338
    %v912 = vmul.f32 %v854, %v854
    %v913 = vrot.slane %v912, 4
    %v914 = vadd.f32 %v912, %v913
    %v915 = vrot.slane %v914, 2
    %v916 = vadd.f32 %v914, %v915
    %v917 = vrot.slane %v916, 1
    %v918 = vadd.f32 %v916, %v917
    %v919 = vmul.f32 %v918, 0.35355338
    %v920 = vmul.f32 %v854, %v855
    %v921 = vrot.slane %v920, 4
    %v922 = vadd.f32 %v920, %v921
    %v923 = vrot.slane %v922, 2
    %v924 = vadd.f32 %v922, %v923
    %v925 = vrot.slane %v924, 1
    %v926 = vadd.f32 %v924, %v925
    %v927 = vmul.f32 %v926, 0.35355338
    %v928 = vmul.f32 %v855, %v855
    %v929 = vrot.slane %v928, 4
    %v930 = vadd.f32 %v928, %v929
    %v931 = vrot.slane %v930, 2
    %v932 = vadd.f32 %v930, %v931
    %v933 = vrot.slane %v932, 1
    %v934 = vadd.f32 %v932, %v933
    %v935 = vmul.f32 %v934, 0.35355338
    %v936 = vmul.f32 %v863, 1.442695
    %v937 = vpow.pop %v936
    %v938 = vmul.f32 %v871, 1.442695
    %v939 = vpow.pop %v938
    %v940 = vmul.f32 %v879, 1.442695
    %v941 = vpow.pop %v940
    %v942 = vmul.f32 %v887, 1.442695
    %v943 = vpow.pop %v942
    %v944 = vadd.f32 %v937, %v939
    %v945 = vadd.f32 %v944, %v941
    %v946 = vadd.f32 %v945, %v943
    %v947 = vrcp.pop %v946
    %v948 = vmul.f32 %v937, %v947
    %v949 = vmul.f32 %v948, %v852
    %v950 = vmul.f32 %v939, %v947
    %v951 = vmul.f32 %v950, %v853
    %v952 = vadd.f32 %v949, %v951
    %v953 = vmul.f32 %v941, %v947
    %v954 = vmul.f32 %v953, %v854
    %v955 = vadd.f32 %v952, %v954
    %v956 = vmul.f32 %v943, %v947
    %v957 = vmul.f32 %v956, %v855
    %v958 = vadd.f32 %v955, %v957
    %v959 = vmul.f32 %v895, 1.442695
    %v960 = vpow.pop %v959
    %v961 = vmul.f32 %v903, 1.442695
    %v962 = vpow.pop %v961
    %v963 = vmul.f32 %v911, 1.442695
    %v964 = vpow.pop %v963
    %v965 = vadd.f32 %v939, %v960
    %v966 = vadd.f32 %v965, %v962
    %v967 = vadd.f32 %v966, %v964
    %v968 = vrcp.pop %v967
    %v969 = vmul.f32 %v939, %v968
    %v970 = vmul.f32 %v969, %v852
    %v971 = vmul.f32 %v960, %v968
    %v972 = vmul.f32 %v971, %v853
    %v973 = vadd.f32 %v970, %v972
    %v974 = vmul.f32 %v962, %v968
    %v975 = vmul.f32 %v974, %v854
    %v976 = vadd.f32 %v973, %v975
    %v977 = vmul.f32 %v964, %v968
    %v978 = vmul.f32 %v977, %v855
    %v979 = vadd.f32 %v976, %v978
    %v980 = vmul.f32 %v919, 1.442695
    %v981 = vpow.pop %v980
    %v982 = vmul.f32 %v927, 1.442695
    %v983 = vpow.pop %v982
    %v984 = vadd.f32 %v941, %v962
    %v985 = vadd.f32 %v984, %v981
    %v986 = vadd.f32 %v985, %v983
    %v987 = vrcp.pop %v986
    %v988 = vmul.f32 %v941, %v987
    %v989 = vmul.f32 %v988, %v852
    %v990 = vmul.f32 %v962, %v987
    %v991 = vmul.f32 %v990, %v853
    %v992 = vadd.f32 %v989, %v991
    %v993 = vmul.f32 %v981, %v987
    %v994 = vmul.f32 %v993, %v854
    %v995 = vadd.f32 %v992, %v994
    %v996 = vmul.f32 %v983, %v987
    %v997 = vmul.f32 %v996, %v855
    %v998 = vadd.f32 %v995, %v997
    %v999 = vmul.f32 %v935, 1.442695
    %v1000 = vpow.pop %v999
    %v1001 = vadd.f32 %v943, %v964
    %v1002 = vadd.f32 %v1001, %v983
    %v1003 = vadd.f32 %v1002, %v1000
    %v1004 = vrcp.pop %v1003
    %v1005 = vmul.f32 %v943, %v1004
    %v1006 = vmul.f32 %v1005, %v852
    %v1007 = vmul.f32 %v964, %v1004
    %v1008 = vmul.f32 %v1007, %v853
    %v1009 = vadd.f32 %v1006, %v1008
    %v1010 = vmul.f32 %v983, %v1004
    %v1011 = vmul.f32 %v1010, %v854
    %v1012 = vadd.f32 %v1009, %v1011
    %v1013 = vmul.f32 %v1000, %v1004
    %v1014 = vmul.f32 %v1013, %v855
    %v1015 = vadd.f32 %v1012, %v1014
    %v1016 = vadd.f32 %v848, %v958
    %v1017 = vadd.f32 %v849, %v979
    %v1018 = vadd.f32 %v850, %v998
    %v1019 = vadd.f32 %v851, %v1015
    %v1020 = vand.u32 2147483647, %v1016
    %v1021 = vand.u32 2147483647, %v1017
    %v1022 = vand.u32 2147483647, %v1018
    %v1023 = vand.u32 2147483647, %v1019
    %v1024 = vand.u32 2147483647, %v958
    %v1025 = vand.u32 2147483647, %v979
    %v1026 = vand.u32 2147483647, %v998
    %v1027 = vand.u32 2147483647, %v1015
    %v1028 = vadd.f32 %v1020, %v1024
    %v1029 = vadd.f32 %v1021, %v1025
    %v1030 = vadd.f32 %v1022, %v1026
    %v1031 = vadd.f32 %v1023, %v1027
    %v1032 = vsub.f32 %v1016, %v958
    %v1033 = vsub.f32 %v1017, %v979
    %v1034 = vsub.f32 %v1018, %v998
    %v1035 = vsub.f32 %v1019, %v1015
    %v1036 = vmul.f32 %v1032, 0.5
    %v1037 = vmul.f32 %v1033, 0.5
    %v1038 = vmul.f32 %v1034, 0.5
    %v1039 = vmul.f32 %v1035, 0.5
    %v1040 = vand.u32 2147483647, %v1036
    %vm1041 = vcmp.le.f32.partialorder %v1040, 0.7853982
    %vm1042 = vcmp.lt.s32.totalorder %v1036, 0
    %v1043 = vand.u32 %v1036, 2139095040
    %v1044 = vshrl.u32 %v1043, 23
    %v1045 = vsub.s32 %v1044, 127
    %v1046 = vand.u32 2147483647, %v1036
    %v1047 = vand.u32 %v1046, 8388607
    %v1048 = vor.u32 %v1047, 8388608
    %v1049 = vsub.s32 0, %v1048
    %v1050 = vadd.s32 %v1045, 1
    %vm1051 = vcmp.gt.s32.totalorder %v1050, 0
    %v1052 = vsel %vm1051, %v1050, 0
    %v1053 = vshrl.u32 %v1052, 5
    %v1054 = vand.u32 %v1052, 31
    %v1055 = vsub.s32 32, %v1054
    %v1056 = vshrl.u32 683565275, %v1055
    %v1057 = vshll.u32 683565275, %v1054
    %v1058 = vshrl.u32 2475754826, %v1055
    %v1059 = vor.u32 %v1057, %v1058
    %v1060 = vshll.u32 2475754826, %v1054
    %v1061 = vshrl.u32 2131351028, %v1055
    %v1062 = vor.u32 %v1060, %v1061
    %v1063 = vshll.u32 2131351028, %v1054
    %v1064 = vshrl.u32 2102212464, %v1055
    %v1065 = vor.u32 %v1063, %v1064
    %v1066 = vshll.u32 2102212464, %v1054
    %v1067 = vshrl.u32 920167782, %v1055
    %v1068 = vor.u32 %v1066, %v1067
    %v1069 = vshll.u32 920167782, %v1054
    %v1070 = vshrl.u32 1326507024, %v1055
    %v1071 = vor.u32 %v1069, %v1070
    %vm1072 = vcmp.lt.s32.totalorder %v1053, 1
    %vm1073 = vcmp.lt.s32.totalorder %v1053, 2
    %vm1074 = vcmp.lt.s32.totalorder %v1053, 3
    %vm1075 = vcmp.lt.s32.totalorder %v1053, 4
    %v1076 = vsel %vm1072, %v1056, %v1059
    %v1077 = vsel %vm1075, %v1065, 2102212464
    %v1078 = vsel %vm1074, %v1062, %v1077
    %v1079 = vsel %vm1073, %v1076, %v1078
    %v1080 = vsel %vm1072, %v1059, %v1062
    %v1081 = vsel %vm1075, %v1068, 920167782
    %v1082 = vsel %vm1074, %v1065, %v1081
    %v1083 = vsel %vm1073, %v1080, %v1082
    %v1084 = vsel %vm1072, %v1062, %v1065
    %v1085 = vsel %vm1075, %v1071, 1326507024
    %v1086 = vsel %vm1074, %v1068, %v1085
    %v1087 = vsel %vm1073, %v1084, %v1086
    %v1088 = vshll.u32 %v1048, 8
    %v1089 = vmul.u32.u64.compose %v1088, %v1087
    %v1090 = vextract.low.u32 %v1089
    %v1091 = vextract.high.u32 %v1089
    %v1092 = vmul.u32.u64.compose %v1088, %v1083
    %v1093 = vextract.low.u32 %v1092
    %v1094 = vextract.high.u32 %v1092
    %v1095 = vmul.u32 %v1088, %v1079
    %v1096 = vadd.s32 %v1091, %v1093
    %vm1097 = vc.u32 %v1091, %v1093
    %v1098 = vadd.s32 %v1094, 1
    %v1099 = vsel %vm1097, %v1098, %v1094
    %v1100 = vadd.s32 %v1095, %v1099
    %v1101 = vadd.s32 %v1100, 536870912
    %v1102 = vshrl.u32 %v1101, 30
    %v1103 = vshll.u32 %v1102, 30
    %v1104 = vsub.s32 %v1100, %v1103
    %vm1105 = vcmp.lt.s32.totalorder %v1104, 0
    %v1106 = vsub.s32 0, %v1104
    %v1107 = vsel %vm1105, %v1106, %v1104
    %v1108 = vclz %v1107
    %v1109 = vsub.s32 %v1108, 2
    %vm1110 = vcmp.gt.s32.totalorder 0, %v1109
    %v1111 = vsel %vm1110, 0, %v1109
    %v1112 = vsub.s32 32, %v1111
    %v1113 = vshll.u32 %v1104, %v1111
    %v1114 = vshrl.u32 %v1096, %v1112
    %v1115 = vor.u32 %v1113, %v1114
    %v1116 = vsub.s32 4294967266, %v1111
    %v1117 = vadd.s32 %v1116, 127
    %v1118 = vshll.u32 %v1117, 23
    %v1119 = vor.u32 4788187, %v1118
    %v1120 = vand.u32 2147483647, %v1119
    %v1122 = vcvt.s32.f32 %v1115
    %v1123 = vmul.f32 %v1122, %v1120
    %v1124 = vxor.u32 %v1123, 2147483648
    %v1125 = vsel %vm1042, %v1124, %v1123
    %v1126 = vsub.s32 4, %v1102
    %v1127 = vsel %vm1042, %v1126, %v1102
    %v1128 = vsel %vm1041, %v1036, %v1125
    %v1129 = vsel %vm1041, 0, %v1127
    %v1130 = vcosq.f32.pop %v1128
    %v1131 = vsinq.f32.pop %v1128
    %vm1132 = vweird.f32 %v1036
    %v1133 = vand.u32 %v1129, 3
    %vm1134 = vcmp.lt.s32.totalorder %v1133, 2
    %vm1135 = vcmp.eq.s32.totalorder %v1133, 0
    %v1136 = vxor.u32 %v1131, 2147483648
    %v1137 = vsel %vm1135, %v1130, %v1136
    %vm1138 = vcmp.eq.s32.totalorder %v1133, 2
    %v1139 = vxor.u32 %v1130, 2147483648
    %v1140 = vsel %vm1138, %v1139, %v1131
    %v1141 = vsel %vm1134, %v1137, %v1140
    %v1142 = vsel %vm1132, nan, %v1141
    %v1143 = vand.u32 2147483647, %v1037
    %vm1144 = vcmp.le.f32.partialorder %v1143, 0.7853982
    %vm1145 = vcmp.lt.s32.totalorder %v1037, 0
    %v1146 = vand.u32 %v1037, 2139095040
    %v1147 = vshrl.u32 %v1146, 23
    %v1148 = vsub.s32 %v1147, 127
    %v1149 = vand.u32 2147483647, %v1037
    %v1150 = vand.u32 %v1149, 8388607
    %v1151 = vor.u32 %v1150, 8388608
    %v1152 = vsub.s32 0, %v1151
    %v1153 = vadd.s32 %v1148, 1
    %vm1154 = vcmp.gt.s32.totalorder %v1153, 0
    %v1155 = vsel %vm1154, %v1153, 0
    %v1156 = vshrl.u32 %v1155, 5
    %v1157 = vand.u32 %v1155, 31
    %v1158 = vsub.s32 32, %v1157
    %v1159 = vshrl.u32 683565275, %v1158
    %v1160 = vshll.u32 683565275, %v1157
    %v1161 = vshrl.u32 2475754826, %v1158
    %v1162 = vor.u32 %v1160, %v1161
    %v1163 = vshll.u32 2475754826, %v1157
    %v1164 = vshrl.u32 2131351028, %v1158
    %v1165 = vor.u32 %v1163, %v1164
    %v1166 = vshll.u32 2131351028, %v1157
    %v1167 = vshrl.u32 2102212464, %v1158
    %v1168 = vor.u32 %v1166, %v1167
    %v1169 = vshll.u32 2102212464, %v1157
    %v1170 = vshrl.u32 920167782, %v1158
    %v1171 = vor.u32 %v1169, %v1170
    %v1172 = vshll.u32 920167782, %v1157
    %v1173 = vshrl.u32 1326507024, %v1158
    %v1174 = vor.u32 %v1172, %v1173
    %vm1175 = vcmp.lt.s32.totalorder %v1156, 1
    %vm1176 = vcmp.lt.s32.totalorder %v1156, 2
    %vm1177 = vcmp.lt.s32.totalorder %v1156, 3
    %vm1178 = vcmp.lt.s32.totalorder %v1156, 4
    %v1179 = vsel %vm1175, %v1159, %v1162
    %v1180 = vsel %vm1178, %v1168, 2102212464
    %v1181 = vsel %vm1177, %v1165, %v1180
    %v1182 = vsel %vm1176, %v1179, %v1181
    %v1183 = vsel %vm1175, %v1162, %v1165
    %v1184 = vsel %vm1178, %v1171, 920167782
    %v1185 = vsel %vm1177, %v1168, %v1184
    %v1186 = vsel %vm1176, %v1183, %v1185
    %v1187 = vsel %vm1175, %v1165, %v1168
    %v1188 = vsel %vm1178, %v1174, 1326507024
    %v1189 = vsel %vm1177, %v1171, %v1188
    %v1190 = vsel %vm1176, %v1187, %v1189
    %v1191 = vshll.u32 %v1151, 8
    %v1192 = vmul.u32.u64.compose %v1191, %v1190
    %v1193 = vextract.low.u32 %v1192
    %v1194 = vextract.high.u32 %v1192
    %v1195 = vmul.u32.u64.compose %v1191, %v1186
    %v1196 = vextract.low.u32 %v1195
    %v1197 = vextract.high.u32 %v1195
    %v1198 = vmul.u32 %v1191, %v1182
    %v1199 = vadd.s32 %v1194, %v1196
    %vm1200 = vc.u32 %v1194, %v1196
    %v1201 = vadd.s32 %v1197, 1
    %v1202 = vsel %vm1200, %v1201, %v1197
    %v1203 = vadd.s32 %v1198, %v1202
    %v1204 = vadd.s32 %v1203, 536870912
    %v1205 = vshrl.u32 %v1204, 30
    %v1206 = vshll.u32 %v1205, 30
    %v1207 = vsub.s32 %v1203, %v1206
    %vm1208 = vcmp.lt.s32.totalorder %v1207, 0
    %v1209 = vsub.s32 0, %v1207
    %v1210 = vsel %vm1208, %v1209, %v1207
    %v1211 = vclz %v1210
    %v1212 = vsub.s32 %v1211, 2
    %vm1213 = vcmp.gt.s32.totalorder 0, %v1212
    %v1214 = vsel %vm1213, 0, %v1212
    %v1215 = vsub.s32 32, %v1214
    %v1216 = vshll.u32 %v1207, %v1214
    %v1217 = vshrl.u32 %v1199, %v1215
    %v1218 = vor.u32 %v1216, %v1217
    %v1219 = vsub.s32 4294967266, %v1214
    %v1220 = vadd.s32 %v1219, 127
    %v1221 = vshll.u32 %v1220, 23
    %v1222 = vor.u32 4788187, %v1221
    %v1223 = vand.u32 2147483647, %v1222
    %v1225 = vcvt.s32.f32 %v1218
    %v1226 = vmul.f32 %v1225, %v1223
    %v1227 = vxor.u32 %v1226, 2147483648
    %v1228 = vsel %vm1145, %v1227, %v1226
    %v1229 = vsub.s32 4, %v1205
    %v1230 = vsel %vm1145, %v1229, %v1205
    %v1231 = vsel %vm1144, %v1037, %v1228
    %v1232 = vsel %vm1144, 0, %v1230
    %v1233 = vcosq.f32.pop %v1231
    %v1234 = vsinq.f32.pop %v1231
    %vm1235 = vweird.f32 %v1037
    %v1236 = vand.u32 %v1232, 3
    %vm1237 = vcmp.lt.s32.totalorder %v1236, 2
    %vm1238 = vcmp.eq.s32.totalorder %v1236, 0
    %v1239 = vxor.u32 %v1234, 2147483648
    %v1240 = vsel %vm1238, %v1233, %v1239
    %vm1241 = vcmp.eq.s32.totalorder %v1236, 2
    %v1242 = vxor.u32 %v1233, 2147483648
    %v1243 = vsel %vm1241, %v1242, %v1234
    %v1244 = vsel %vm1237, %v1240, %v1243
    %v1245 = vsel %vm1235, nan, %v1244
    %v1246 = vand.u32 2147483647, %v1038
    %vm1247 = vcmp.le.f32.partialorder %v1246, 0.7853982
    %vm1248 = vcmp.lt.s32.totalorder %v1038, 0
    %v1249 = vand.u32 %v1038, 2139095040
    %v1250 = vshrl.u32 %v1249, 23
    %v1251 = vsub.s32 %v1250, 127
    %v1252 = vand.u32 2147483647, %v1038
    %v1253 = vand.u32 %v1252, 8388607
    %v1254 = vor.u32 %v1253, 8388608
    %v1255 = vsub.s32 0, %v1254
    %v1256 = vadd.s32 %v1251, 1
    %vm1257 = vcmp.gt.s32.totalorder %v1256, 0
    %v1258 = vsel %vm1257, %v1256, 0
    %v1259 = vshrl.u32 %v1258, 5
    %v1260 = vand.u32 %v1258, 31
    %v1261 = vsub.s32 32, %v1260
    %v1262 = vshrl.u32 683565275, %v1261
    %v1263 = vshll.u32 683565275, %v1260
    %v1264 = vshrl.u32 2475754826, %v1261
    %v1265 = vor.u32 %v1263, %v1264
    %v1266 = vshll.u32 2475754826, %v1260
    %v1267 = vshrl.u32 2131351028, %v1261
    %v1268 = vor.u32 %v1266, %v1267
    %v1269 = vshll.u32 2131351028, %v1260
    %v1270 = vshrl.u32 2102212464, %v1261
    %v1271 = vor.u32 %v1269, %v1270
    %v1272 = vshll.u32 2102212464, %v1260
    %v1273 = vshrl.u32 920167782, %v1261
    %v1274 = vor.u32 %v1272, %v1273
    %v1275 = vshll.u32 920167782, %v1260
    %v1276 = vshrl.u32 1326507024, %v1261
    %v1277 = vor.u32 %v1275, %v1276
    %vm1278 = vcmp.lt.s32.totalorder %v1259, 1
    %vm1279 = vcmp.lt.s32.totalorder %v1259, 2
    %vm1280 = vcmp.lt.s32.totalorder %v1259, 3
    %vm1281 = vcmp.lt.s32.totalorder %v1259, 4
    %v1282 = vsel %vm1278, %v1262, %v1265
    %v1283 = vsel %vm1281, %v1271, 2102212464
    %v1284 = vsel %vm1280, %v1268, %v1283
    %v1285 = vsel %vm1279, %v1282, %v1284
    %v1286 = vsel %vm1278, %v1265, %v1268
    %v1287 = vsel %vm1281, %v1274, 920167782
    %v1288 = vsel %vm1280, %v1271, %v1287
    %v1289 = vsel %vm1279, %v1286, %v1288
    %v1290 = vsel %vm1278, %v1268, %v1271
    %v1291 = vsel %vm1281, %v1277, 1326507024
    %v1292 = vsel %vm1280, %v1274, %v1291
    %v1293 = vsel %vm1279, %v1290, %v1292
    %v1294 = vshll.u32 %v1254, 8
    %v1295 = vmul.u32.u64.compose %v1294, %v1293
    %v1296 = vextract.low.u32 %v1295
    %v1297 = vextract.high.u32 %v1295
    %v1298 = vmul.u32.u64.compose %v1294, %v1289
    %v1299 = vextract.low.u32 %v1298
    %v1300 = vextract.high.u32 %v1298
    %v1301 = vmul.u32 %v1294, %v1285
    %v1302 = vadd.s32 %v1297, %v1299
    %vm1303 = vc.u32 %v1297, %v1299
    %v1304 = vadd.s32 %v1300, 1
    %v1305 = vsel %vm1303, %v1304, %v1300
    %v1306 = vadd.s32 %v1301, %v1305
    %v1307 = vadd.s32 %v1306, 536870912
    %v1308 = vshrl.u32 %v1307, 30
    %v1309 = vshll.u32 %v1308, 30
    %v1310 = vsub.s32 %v1306, %v1309
    %vm1311 = vcmp.lt.s32.totalorder %v1310, 0
    %v1312 = vsub.s32 0, %v1310
    %v1313 = vsel %vm1311, %v1312, %v1310
    %v1314 = vclz %v1313
    %v1315 = vsub.s32 %v1314, 2
    %vm1316 = vcmp.gt.s32.totalorder 0, %v1315
    %v1317 = vsel %vm1316, 0, %v1315
    %v1318 = vsub.s32 32, %v1317
    %v1319 = vshll.u32 %v1310, %v1317
    %v1320 = vshrl.u32 %v1302, %v1318
    %v1321 = vor.u32 %v1319, %v1320
    %v1322 = vsub.s32 4294967266, %v1317
    %v1323 = vadd.s32 %v1322, 127
    %v1324 = vshll.u32 %v1323, 23
    %v1325 = vor.u32 4788187, %v1324
    %v1326 = vand.u32 2147483647, %v1325
    %v1328 = vcvt.s32.f32 %v1321
    %v1329 = vmul.f32 %v1328, %v1326
    %v1330 = vxor.u32 %v1329, 2147483648
    %v1331 = vsel %vm1248, %v1330, %v1329
    %v1332 = vsub.s32 4, %v1308
    %v1333 = vsel %vm1248, %v1332, %v1308
    %v1334 = vsel %vm1247, %v1038, %v1331
    %v1335 = vsel %vm1247, 0, %v1333
    %v1336 = vcosq.f32.pop %v1334
    %v1337 = vsinq.f32.pop %v1334
    %vm1338 = vweird.f32 %v1038
    %v1339 = vand.u32 %v1335, 3
    %vm1340 = vcmp.lt.s32.totalorder %v1339, 2
    %vm1341 = vcmp.eq.s32.totalorder %v1339, 0
    %v1342 = vxor.u32 %v1337, 2147483648
    %v1343 = vsel %vm1341, %v1336, %v1342
    %vm1344 = vcmp.eq.s32.totalorder %v1339, 2
    %v1345 = vxor.u32 %v1336, 2147483648
    %v1346 = vsel %vm1344, %v1345, %v1337
    %v1347 = vsel %vm1340, %v1343, %v1346
    %v1348 = vsel %vm1338, nan, %v1347
    %v1349 = vand.u32 2147483647, %v1039
    %vm1350 = vcmp.le.f32.partialorder %v1349, 0.7853982
    %vm1351 = vcmp.lt.s32.totalorder %v1039, 0
    %v1352 = vand.u32 %v1039, 2139095040
    %v1353 = vshrl.u32 %v1352, 23
    %v1354 = vsub.s32 %v1353, 127
    %v1355 = vand.u32 2147483647, %v1039
    %v1356 = vand.u32 %v1355, 8388607
    %v1357 = vor.u32 %v1356, 8388608
    %v1358 = vsub.s32 0, %v1357
    %v1359 = vadd.s32 %v1354, 1
    %vm1360 = vcmp.gt.s32.totalorder %v1359, 0
    %v1361 = vsel %vm1360, %v1359, 0
    %v1362 = vshrl.u32 %v1361, 5
    %v1363 = vand.u32 %v1361, 31
    %v1364 = vsub.s32 32, %v1363
    %v1365 = vshrl.u32 683565275, %v1364
    %v1366 = vshll.u32 683565275, %v1363
    %v1367 = vshrl.u32 2475754826, %v1364
    %v1368 = vor.u32 %v1366, %v1367
    %v1369 = vshll.u32 2475754826, %v1363
    %v1370 = vshrl.u32 2131351028, %v1364
    %v1371 = vor.u32 %v1369, %v1370
    %v1372 = vshll.u32 2131351028, %v1363
    %v1373 = vshrl.u32 2102212464, %v1364
    %v1374 = vor.u32 %v1372, %v1373
    %v1375 = vshll.u32 2102212464, %v1363
    %v1376 = vshrl.u32 920167782, %v1364
    %v1377 = vor.u32 %v1375, %v1376
    %v1378 = vshll.u32 920167782, %v1363
    %v1379 = vshrl.u32 1326507024, %v1364
    %v1380 = vor.u32 %v1378, %v1379
    %vm1381 = vcmp.lt.s32.totalorder %v1362, 1
    %vm1382 = vcmp.lt.s32.totalorder %v1362, 2
    %vm1383 = vcmp.lt.s32.totalorder %v1362, 3
    %vm1384 = vcmp.lt.s32.totalorder %v1362, 4
    %v1385 = vsel %vm1381, %v1365, %v1368
    %v1386 = vsel %vm1384, %v1374, 2102212464
    %v1387 = vsel %vm1383, %v1371, %v1386
    %v1388 = vsel %vm1382, %v1385, %v1387
    %v1389 = vsel %vm1381, %v1368, %v1371
    %v1390 = vsel %vm1384, %v1377, 920167782
    %v1391 = vsel %vm1383, %v1374, %v1390
    %v1392 = vsel %vm1382, %v1389, %v1391
    %v1393 = vsel %vm1381, %v1371, %v1374
    %v1394 = vsel %vm1384, %v1380, 1326507024
    %v1395 = vsel %vm1383, %v1377, %v1394
    %v1396 = vsel %vm1382, %v1393, %v1395
    %v1397 = vshll.u32 %v1357, 8
    %v1398 = vmul.u32.u64.compose %v1397, %v1396
    %v1399 = vextract.low.u32 %v1398
    %v1400 = vextract.high.u32 %v1398
    %v1401 = vmul.u32.u64.compose %v1397, %v1392
    %v1402 = vextract.low.u32 %v1401
    %v1403 = vextract.high.u32 %v1401
    %v1404 = vmul.u32 %v1397, %v1388
    %v1405 = vadd.s32 %v1400, %v1402
    %vm1406 = vc.u32 %v1400, %v1402
    %v1407 = vadd.s32 %v1403, 1
    %v1408 = vsel %vm1406, %v1407, %v1403
    %v1409 = vadd.s32 %v1404, %v1408
    %v1410 = vadd.s32 %v1409, 536870912
    %v1411 = vshrl.u32 %v1410, 30
    %v1412 = vshll.u32 %v1411, 30
    %v1413 = vsub.s32 %v1409, %v1412
    %vm1414 = vcmp.lt.s32.totalorder %v1413, 0
    %v1415 = vsub.s32 0, %v1413
    %v1416 = vsel %vm1414, %v1415, %v1413
    %v1417 = vclz %v1416
    %v1418 = vsub.s32 %v1417, 2
    %vm1419 = vcmp.gt.s32.totalorder 0, %v1418
    %v1420 = vsel %vm1419, 0, %v1418
    %v1421 = vsub.s32 32, %v1420
    %v1422 = vshll.u32 %v1413, %v1420
    %v1423 = vshrl.u32 %v1405, %v1421
    %v1424 = vor.u32 %v1422, %v1423
    %v1425 = vsub.s32 4294967266, %v1420
    %v1426 = vadd.s32 %v1425, 127
    %v1427 = vshll.u32 %v1426, 23
    %v1428 = vor.u32 4788187, %v1427
    %v1429 = vand.u32 2147483647, %v1428
    %v1431 = vcvt.s32.f32 %v1424
    %v1432 = vmul.f32 %v1431, %v1429
    %v1433 = vxor.u32 %v1432, 2147483648
    %v1434 = vsel %vm1351, %v1433, %v1432
    %v1435 = vsub.s32 4, %v1411
    %v1436 = vsel %vm1351, %v1435, %v1411
    %v1437 = vsel %vm1350, %v1039, %v1434
    %v1438 = vsel %vm1350, 0, %v1436
    %v1439 = vcosq.f32.pop %v1437
    %v1440 = vsinq.f32.pop %v1437
    %vm1441 = vweird.f32 %v1039
    %v1442 = vand.u32 %v1438, 3
    %vm1443 = vcmp.lt.s32.totalorder %v1442, 2
    %vm1444 = vcmp.eq.s32.totalorder %v1442, 0
    %v1445 = vxor.u32 %v1440, 2147483648
    %v1446 = vsel %vm1444, %v1439, %v1445
    %vm1447 = vcmp.eq.s32.totalorder %v1442, 2
    %v1448 = vxor.u32 %v1439, 2147483648
    %v1449 = vsel %vm1447, %v1448, %v1440
    %v1450 = vsel %vm1443, %v1446, %v1449
    %v1451 = vsel %vm1441, nan, %v1450
    %v1452 = vmul.f32 %v1028, %v1142
    %v1453 = vmul.f32 %v1029, %v1245
    %v1454 = vmul.f32 %v1030, %v1348
    %v1455 = vmul.f32 %v1031, %v1451
    %v1456 = vadd.f32 %v1452, %v1453
    %v1457 = vadd.f32 %v1456, %v1454
    %v1458 = vadd.f32 %v1457, %v1455
    %v1459 = vrot.slane %v1458, 4
    %v1460 = vadd.f32 %v1458, %v1459
    %v1461 = vrot.slane %v1460, 2
    %v1462 = vadd.f32 %v1460, %v1461
    %v1463 = vrot.slane %v1462, 1
    %v1464 = vadd.f32 %v1462, %v1463
    %v1465 = vmul.f32 %v1464, %v36
    %v1466 = vsub.f32 %v1452, %v1465
    %v1467 = vsub.f32 %v1453, %v1465
    %v1468 = vsub.f32 %v1454, %v1465
    %v1469 = vsub.f32 %v1455, %v1465
    %v1470 = vmul.f32 %v1466, %v1466
    %v1471 = vmul.f32 %v1467, %v1467
    %v1472 = vmul.f32 %v1468, %v1468
    %v1473 = vmul.f32 %v1469, %v1469
    %v1474 = vadd.f32 %v1470, %v1471
    %v1475 = vadd.f32 %v1474, %v1472
    %v1476 = vadd.f32 %v1475, %v1473
    %v1477 = vrot.slane %v1476, 4
    %v1478 = vadd.f32 %v1476, %v1477
    %v1479 = vrot.slane %v1478, 2
    %v1480 = vadd.f32 %v1478, %v1479
    %v1481 = vrot.slane %v1480, 1
    %v1482 = vadd.f32 %v1480, %v1481
    %v1483 = vmul.f32 %v1482, %v36
    %v1484 = vadd.f32 %v1483, 1e-05
    %v1485 = vrsqrt.pop %v1484
    %v1486 = vmul.f32 %v1466, %v1485
    %v1487 = vmul.f32 %v1467, %v1485
    %v1488 = vmul.f32 %v1468, %v1485
    %v1489 = vmul.f32 %v1469, %v1485
    %v1490 = vmul.f32 %v1486, %v176
    %v1491 = vmul.f32 %v1487, %v180
    %v1492 = vmul.f32 %v1488, %v184
    %v1493 = vmul.f32 %v1489, %v188
    %v1494 = vadd.f32 %v1490, %v192
    %v1495 = vadd.f32 %v1491, %v196
    %v1496 = vadd.f32 %v1492, %v200
    %v1497 = vadd.f32 %v1493, %v204
    %v1498 = vld [vmem:[%s2] sm:$0xf]
    %v1499 = vld [vmem:[%s2 + $0x4] sm:$0xf]
    %v1500 = vld [vmem:[%s2 + $0x8] sm:$0xf]
    %v1501 = vld [vmem:[%s2 + $0xc] sm:$0xf]
    %v1502 = vld [vmem:[%s2 + $0x10] sm:$0xf]
    %v1503 = vld [vmem:[%s2 + $0x14] sm:$0xf]
    %v1504 = vld [vmem:[%s2 + $0x18] sm:$0xf]
    %v1505 = vld [vmem:[%s2 + $0x1c] sm:$0xf]
    %v1506 = vld [vmem:[%s2 + $0x20] sm:$0xf]
    %v1507 = vld [vmem:[%s2 + $0x24] sm:$0xf]
    %v1508 = vld [vmem:[%s2 + $0x28] sm:$0xf]
    %v1509 = vld [vmem:[%s2 + $0x2c] sm:$0xf]
    %v1510 = vld [vmem:[%s2 + $0x30] sm:$0xf]
    %v1511 = vld [vmem:[%s2 + $0x34] sm:$0xf]
    %v1512 = vld [vmem:[%s2 + $0x38] sm:$0xf]
    %v1513 = vld [vmem:[%s2 + $0x3c] sm:$0xf]
    %v1514 = vld [vmem:[%s2 + $0x40] sm:$0xf]
    %v1515 = vld [vmem:[%s2 + $0x44] sm:$0xf]
    %v1516 = vld [vmem:[%s2 + $0x48] sm:$0xf]
    %v1517 = vld [vmem:[%s2 + $0x4c] sm:$0xf]
    %v1518 = vld [vmem:[%s2 + $0x50] sm:$0xf]
    %v1519 = vld [vmem:[%s2 + $0x54] sm:$0xf]
    %v1520 = vld [vmem:[%s2 + $0x58] sm:$0xf]
    %v1521 = vld [vmem:[%s2 + $0x5c] sm:$0xf]
    %v1522 = vld [vmem:[%s2 + $0x60] sm:$0xf]
    %v1523 = vld [vmem:[%s2 + $0x64] sm:$0xf]
    %v1524 = vld [vmem:[%s2 + $0x68] sm:$0xf]
    %v1525 = vld [vmem:[%s2 + $0x6c] sm:$0xf]
    %v1526 = vld [vmem:[%s2 + $0x70] sm:$0xf]
    %v1527 = vld [vmem:[%s2 + $0x74] sm:$0xf]
    %v1528 = vld [vmem:[%s2 + $0x78] sm:$0xf]
    %v1529 = vld [vmem:[%s2 + $0x7c] sm:$0xf]
    %v1530 = vpack.c.bf16 %v1495, %v1494
    %v1531 = vpack.c.bf16 %v1497, %v1496
    %v1532 = vld [vmem:[%s3] sm:$0xff]
    %v1533 = vld [vmem:[%s3 + $0x8] sm:$0xff]
    %v1534 = vld [vmem:[%s3 + $0x10] sm:$0xff]
    %v1535 = vld [vmem:[%s3 + $0x18] sm:$0xff]
    %v1536 = vld [vmem:[%s3 + $0x20] sm:$0xff]
    %v1537 = vld [vmem:[%s3 + $0x28] sm:$0xff]
    %v1538 = vld [vmem:[%s3 + $0x30] sm:$0xff]
    %v1539 = vld [vmem:[%s3 + $0x38] sm:$0xff]
    %v1540 = vld [vmem:[%s3 + $0x40] sm:$0xff]
    %v1541 = vld [vmem:[%s3 + $0x48] sm:$0xff]
    %v1542 = vld [vmem:[%s3 + $0x50] sm:$0xff]
    %v1543 = vld [vmem:[%s3 + $0x58] sm:$0xff]
    %v1544 = vld [vmem:[%s3 + $0x60] sm:$0xff]
    %v1545 = vld [vmem:[%s3 + $0x68] sm:$0xff]
    %v1546 = vld [vmem:[%s3 + $0x70] sm:$0xff]
    %v1547 = vld [vmem:[%s3 + $0x78] sm:$0xff]
    %v1548 = vld [vmem:[%s3 + $0x80] sm:$0xff]
    %v1549 = vld [vmem:[%s3 + $0x88] sm:$0xff]
    %v1550 = vld [vmem:[%s3 + $0x90] sm:$0xff]
    %v1551 = vld [vmem:[%s3 + $0x98] sm:$0xff]
    %v1552 = vld [vmem:[%s3 + $0xa0] sm:$0xff]
    %v1553 = vld [vmem:[%s3 + $0xa8] sm:$0xff]
    %v1554 = vld [vmem:[%s3 + $0xb0] sm:$0xff]
    %v1555 = vld [vmem:[%s3 + $0xb8] sm:$0xff]
    %v1556 = vld [vmem:[%s3 + $0xc0] sm:$0xff]
    %v1557 = vld [vmem:[%s3 + $0xc8] sm:$0xff]
    %v1558 = vld [vmem:[%s3 + $0xd0] sm:$0xff]
    %v1559 = vld [vmem:[%s3 + $0xd8] sm:$0xff]
    %v1560 = vld [vmem:[%s3 + $0xe0] sm:$0xff]
    %v1561 = vld [vmem:[%s3 + $0xe8] sm:$0xff]
    %v1562 = vld [vmem:[%s3 + $0xf0] sm:$0xff]
    %v1563 = vld [vmem:[%s3 + $0xf8] sm:$0xff]
    %1565 = vset.pattern.permute.xlu0 0
    %1566 = vperm.xlu0 %1565, %v1532
    %v1567 = vpop.permute.xlu0 %1566
    %1570 = vset.pattern.permute.xlu0 0
    %1571 = vperm.xlu0 %1570, %v1533
    %v1572 = vpop.permute.xlu0 %1571
    %1575 = vset.pattern.permute.xlu0 0
    %1576 = vperm.xlu0 %1575, %v1534
    %v1577 = vpop.permute.xlu0 %1576
    %1580 = vset.pattern.permute.xlu0 0
    %1581 = vperm.xlu0 %1580, %v1535
    %v1582 = vpop.permute.xlu0 %1581
    %1585 = vset.pattern.permute.xlu0 0
    %1586 = vperm.xlu0 %1585, %v1536
    %v1587 = vpop.permute.xlu0 %1586
    %1590 = vset.pattern.permute.xlu0 0
    %1591 = vperm.xlu0 %1590, %v1537
    %v1592 = vpop.permute.xlu0 %1591
    %1595 = vset.pattern.permute.xlu0 0
    %1596 = vperm.xlu0 %1595, %v1538
    %v1597 = vpop.permute.xlu0 %1596
    %1600 = vset.pattern.permute.xlu0 0
    %1601 = vperm.xlu0 %1600, %v1539
    %v1602 = vpop.permute.xlu0 %1601
    %1605 = vset.pattern.permute.xlu0 0
    %1606 = vperm.xlu0 %1605, %v1540
    %v1607 = vpop.permute.xlu0 %1606
    %1610 = vset.pattern.permute.xlu0 0
    %1611 = vperm.xlu0 %1610, %v1541
    %v1612 = vpop.permute.xlu0 %1611
    %1615 = vset.pattern.permute.xlu0 0
    %1616 = vperm.xlu0 %1615, %v1542
    %v1617 = vpop.permute.xlu0 %1616
    %1620 = vset.pattern.permute.xlu0 0
    %1621 = vperm.xlu0 %1620, %v1543
    %v1622 = vpop.permute.xlu0 %1621
    %1625 = vset.pattern.permute.xlu0 0
    %1626 = vperm.xlu0 %1625, %v1544
    %v1627 = vpop.permute.xlu0 %1626
    %1630 = vset.pattern.permute.xlu0 0
    %1631 = vperm.xlu0 %1630, %v1545
    %v1632 = vpop.permute.xlu0 %1631
    %1635 = vset.pattern.permute.xlu0 0
    %1636 = vperm.xlu0 %1635, %v1546
    %v1637 = vpop.permute.xlu0 %1636
    %1640 = vset.pattern.permute.xlu0 0
    %1641 = vperm.xlu0 %1640, %v1547
    %v1642 = vpop.permute.xlu0 %1641
    %1645 = vset.pattern.permute.xlu0 0
    %1646 = vperm.xlu0 %1645, %v1548
    %v1647 = vpop.permute.xlu0 %1646
    %1650 = vset.pattern.permute.xlu0 0
    %1651 = vperm.xlu0 %1650, %v1549
    %v1652 = vpop.permute.xlu0 %1651
    %1655 = vset.pattern.permute.xlu0 0
    %1656 = vperm.xlu0 %1655, %v1550
    %v1657 = vpop.permute.xlu0 %1656
    %1660 = vset.pattern.permute.xlu0 0
    %1661 = vperm.xlu0 %1660, %v1551
    %v1662 = vpop.permute.xlu0 %1661
    %1665 = vset.pattern.permute.xlu0 0
    %1666 = vperm.xlu0 %1665, %v1552
    %v1667 = vpop.permute.xlu0 %1666
    %1670 = vset.pattern.permute.xlu0 0
    %1671 = vperm.xlu0 %1670, %v1553
    %v1672 = vpop.permute.xlu0 %1671
    %1675 = vset.pattern.permute.xlu0 0
    %1676 = vperm.xlu0 %1675, %v1554
    %v1677 = vpop.permute.xlu0 %1676
    %1680 = vset.pattern.permute.xlu0 0
    %1681 = vperm.xlu0 %1680, %v1555
    %v1682 = vpop.permute.xlu0 %1681
    %1685 = vset.pattern.permute.xlu0 0
    %1686 = vperm.xlu0 %1685, %v1556
    %v1687 = vpop.permute.xlu0 %1686
    %1690 = vset.pattern.permute.xlu0 0
    %1691 = vperm.xlu0 %1690, %v1557
    %v1692 = vpop.permute.xlu0 %1691
    %1695 = vset.pattern.permute.xlu0 0
    %1696 = vperm.xlu0 %1695, %v1558
    %v1697 = vpop.permute.xlu0 %1696
    %1700 = vset.pattern.permute.xlu0 0
    %1701 = vperm.xlu0 %1700, %v1559
    %v1702 = vpop.permute.xlu0 %1701
    %1705 = vset.pattern.permute.xlu0 0
    %1706 = vperm.xlu0 %1705, %v1560
    %v1707 = vpop.permute.xlu0 %1706
    %1710 = vset.pattern.permute.xlu0 0
    %1711 = vperm.xlu0 %1710, %v1561
    %v1712 = vpop.permute.xlu0 %1711
    %1715 = vset.pattern.permute.xlu0 0
    %1716 = vperm.xlu0 %1715, %v1562
    %v1717 = vpop.permute.xlu0 %1716
    %1720 = vset.pattern.permute.xlu0 0
    %1721 = vperm.xlu0 %1720, %v1563
    %v1722 = vpop.permute.xlu0 %1721
    %v1756 = vunpack.c.l.b16 %v1498
    %v1757 = vunpack.c.l.b16 %v1499
    %v1758 = vunpack.c.l.b16 %v1500
    %v1759 = vunpack.c.l.b16 %v1501
    %v1760 = vunpack.c.l.b16 %v1502
    %v1761 = vunpack.c.l.b16 %v1503
    %v1762 = vunpack.c.l.b16 %v1504
    %v1763 = vunpack.c.l.b16 %v1505
    %v1764 = vunpack.c.l.b16 %v1506
    %v1765 = vunpack.c.l.b16 %v1507
    %v1766 = vunpack.c.l.b16 %v1508
    %v1767 = vunpack.c.l.b16 %v1509
    %v1768 = vunpack.c.l.b16 %v1510
    %v1769 = vunpack.c.l.b16 %v1511
    %v1770 = vunpack.c.l.b16 %v1512
    %v1771 = vunpack.c.l.b16 %v1513
    %v1772 = vunpack.c.l.b16 %v1514
    %v1773 = vunpack.c.l.b16 %v1515
    %v1774 = vunpack.c.l.b16 %v1516
    %v1775 = vunpack.c.l.b16 %v1517
    %v1776 = vunpack.c.l.b16 %v1518
    %v1777 = vunpack.c.l.b16 %v1519
    %v1778 = vunpack.c.l.b16 %v1520
    %v1779 = vunpack.c.l.b16 %v1521
    %v1780 = vunpack.c.l.b16 %v1522
    %v1781 = vunpack.c.l.b16 %v1523
    %v1782 = vunpack.c.l.b16 %v1524
    %v1783 = vunpack.c.l.b16 %v1525
    %v1784 = vunpack.c.l.b16 %v1526
    %v1785 = vunpack.c.l.b16 %v1527
    %v1786 = vunpack.c.l.b16 %v1528
    %v1787 = vunpack.c.l.b16 %v1529
    %v1788 = vpack.c.b16 %v1757, %v1756
    %v1789 = vpack.c.b16 %v1759, %v1758
    %v1790 = vpack.c.b16 %v1761, %v1760
    %v1791 = vpack.c.b16 %v1763, %v1762
    %v1792 = vpack.c.b16 %v1765, %v1764
    %v1793 = vpack.c.b16 %v1767, %v1766
    %v1794 = vpack.c.b16 %v1769, %v1768
    %v1795 = vpack.c.b16 %v1771, %v1770
    %v1796 = vpack.c.b16 %v1773, %v1772
    %v1797 = vpack.c.b16 %v1775, %v1774
    %v1798 = vpack.c.b16 %v1777, %v1776
    %v1799 = vpack.c.b16 %v1779, %v1778
    %v1800 = vpack.c.b16 %v1781, %v1780
    %v1801 = vpack.c.b16 %v1783, %v1782
    %v1802 = vpack.c.b16 %v1785, %v1784
    %v1803 = vpack.c.b16 %v1787, %v1786
    %vm1804 = vcmask 261120
    %v1806 = vsel %vm1804, %v1788, 0
    %v1809 = vsel %vm1804, %v1789, 0
    %v1812 = vsel %vm1804, %v1790, 0
    %v1815 = vsel %vm1804, %v1791, 0
    %v1818 = vsel %vm1804, %v1792, 0
    %v1821 = vsel %vm1804, %v1793, 0
    %v1824 = vsel %vm1804, %v1794, 0
    %v1827 = vsel %vm1804, %v1795, 0
    %v1830 = vsel %vm1804, %v1796, 0
    %v1833 = vsel %vm1804, %v1797, 0
    %v1836 = vsel %vm1804, %v1798, 0
    %v1839 = vsel %vm1804, %v1799, 0
    %v1842 = vsel %vm1804, %v1800, 0
    %v1845 = vsel %vm1804, %v1801, 0
    %v1848 = vsel %vm1804, %v1802, 0
    %v1851 = vsel %vm1804, %v1803, 0
    %1853 = vmatprep.subr.bf16.mxu0 0
    %1854 = vmatpush1.bf16.msra.mxu0 %v1530
    %1855 = vmatprep.subr.bf16.mxu0 0
    %1856 = vmatpush1.bf16.msra.mxu0 %v1531
    %1857 = vmatprep.subr.bf16.mxu0 0
    %1858 = vmatpush1.bf16.msra.mxu0 0
    %1859 = vmatprep.subr.bf16.mxu0 0
    %1860 = vmatpush1.bf16.msra.mxu0 0
    %1861 = vmatprep.subr.bf16.mxu0 0
    %1862 = vmatpush1.bf16.msra.mxu0 0
    %1863 = vmatprep.subr.bf16.mxu0 0
    %1864 = vmatpush1.bf16.msra.mxu0 0
    %1865 = vmatprep.subr.bf16.mxu0 0
    %1866 = vmatpush1.bf16.msra.mxu0 0
    %1867 = vmatprep.subr.bf16.mxu0 0
    %1868 = vmatpush1.bf16.msra.mxu0 0
    %1869 = vmatprep.subr.bf16.mxu0 0
    %1870 = vmatpush1.bf16.msra.mxu0 0
    %1871 = vmatprep.subr.bf16.mxu0 0
    %1872 = vmatpush1.bf16.msra.mxu0 0
    %1873 = vmatprep.subr.bf16.mxu0 0
    %1874 = vmatpush1.bf16.msra.mxu0 0
    %1875 = vmatprep.subr.bf16.mxu0 0
    %1876 = vmatpush1.bf16.msra.mxu0 0
    %1877 = vmatprep.subr.bf16.mxu0 0
    %1878 = vmatpush1.bf16.msra.mxu0 0
    %1879 = vmatprep.subr.bf16.mxu0 0
    %1880 = vmatpush1.bf16.msra.mxu0 0
    %1881 = vmatprep.subr.bf16.mxu0 0
    %1882 = vmatpush1.bf16.msra.mxu0 0
    %1883 = vmatprep.subr.bf16.mxu0 0
    %1884 = vmatpush1.bf16.msra.mxu0 0
    %1885 = vmatprep.mubr.bf16.mxu0 0
    %1886 = vmatmul.mubr.bf16.gmra.mrb[0].mxu0 %v1806
    %v1887 = vpop.f32.mrb[0].mxu0
    %v1888 = vadd.f32 %v1567, %v1887
    %v1889 = vpop.f32.mrb[0].mxu0
    %v1890 = vpop.f32.mrb[0].mxu0
    %v1891 = vadd.f32 %v1572, %v1890
    %v1892 = vpop.f32.mrb[0].mxu0
    %1893 = vmatprep.mubr.bf16.mxu0 0
    %1894 = vmatmul.mubr.bf16.gmra.mrb[0].mxu0 %v1809
    %v1895 = vpop.f32.mrb[0].mxu0
    %v1896 = vadd.f32 %v1577, %v1895
    %v1897 = vpop.f32.mrb[0].mxu0
    %v1898 = vpop.f32.mrb[0].mxu0
    %v1899 = vadd.f32 %v1582, %v1898
    %v1900 = vpop.f32.mrb[0].mxu0
    %1901 = vmatprep.mubr.bf16.mxu0 0
    %1902 = vmatmul.mubr.bf16.gmra.mrb[0].mxu0 %v1812
    %v1903 = vpop.f32.mrb[0].mxu0
    %v1904 = vadd.f32 %v1587, %v1903
    %v1905 = vpop.f32.mrb[0].mxu0
    %v1906 = vpop.f32.mrb[0].mxu0
    %v1907 = vadd.f32 %v1592, %v1906
    %v1908 = vpop.f32.mrb[0].mxu0
    %1909 = vmatprep.mubr.bf16.mxu0 0
    %1910 = vmatmul.mubr.bf16.gmra.mrb[0].mxu0 %v1815
    %v1911 = vpop.f32.mrb[0].mxu0
    %v1912 = vadd.f32 %v1597, %v1911
    %v1913 = vpop.f32.mrb[0].mxu0
    %v1914 = vpop.f32.mrb[0].mxu0
    %v1915 = vadd.f32 %v1602, %v1914
    %v1916 = vpop.f32.mrb[0].mxu0
    %1917 = vmatprep.mubr.bf16.mxu0 0
    %1918 = vmatmul.mubr.bf16.gmra.mrb[0].mxu0 %v1818
    %v1919 = vpop.f32.mrb[0].mxu0
    %v1920 = vadd.f32 %v1607, %v1919
    %v1921 = vpop.f32.mrb[0].mxu0
    %v1922 = vpop.f32.mrb[0].mxu0
    %v1923 = vadd.f32 %v1612, %v1922
    %v1924 = vpop.f32.mrb[0].mxu0
    %1925 = vmatprep.mubr.bf16.mxu0 0
    %1926 = vmatmul.mubr.bf16.gmra.mrb[0].mxu0 %v1821
    %v1927 = vpop.f32.mrb[0].mxu0
    %v1928 = vadd.f32 %v1617, %v1927
    %v1929 = vpop.f32.mrb[0].mxu0
    %v1930 = vpop.f32.mrb[0].mxu0
    %v1931 = vadd.f32 %v1622, %v1930
    %v1932 = vpop.f32.mrb[0].mxu0
    %1933 = vmatprep.mubr.bf16.mxu0 0
    %1934 = vmatmul.mubr.bf16.gmra.mrb[0].mxu0 %v1824
    %v1935 = vpop.f32.mrb[0].mxu0
    %v1936 = vadd.f32 %v1627, %v1935
    %v1937 = vpop.f32.mrb[0].mxu0
    %v1938 = vpop.f32.mrb[0].mxu0
    %v1939 = vadd.f32 %v1632, %v1938
    %v1940 = vpop.f32.mrb[0].mxu0
    %1941 = vmatprep.mubr.bf16.mxu0 0
    %1942 = vmatmul.mubr.bf16.gmra.mrb[0].mxu0 %v1827
    %v1943 = vpop.f32.mrb[0].mxu0
    %v1944 = vadd.f32 %v1637, %v1943
    %v1945 = vpop.f32.mrb[0].mxu0
    %v1946 = vpop.f32.mrb[0].mxu0
    %v1947 = vadd.f32 %v1642, %v1946
    %v1948 = vpop.f32.mrb[0].mxu0
    %1949 = vmatprep.mubr.bf16.mxu0 0
    %1950 = vmatmul.mubr.bf16.gmra.mrb[0].mxu0 %v1830
    %v1951 = vpop.f32.mrb[0].mxu0
    %v1952 = vadd.f32 %v1647, %v1951
    %v1953 = vpop.f32.mrb[0].mxu0
    %v1954 = vpop.f32.mrb[0].mxu0
    %v1955 = vadd.f32 %v1652, %v1954
    %v1956 = vpop.f32.mrb[0].mxu0
    %1957 = vmatprep.mubr.bf16.mxu0 0
    %1958 = vmatmul.mubr.bf16.gmra.mrb[0].mxu0 %v1833
    %v1959 = vpop.f32.mrb[0].mxu0
    %v1960 = vadd.f32 %v1657, %v1959
    %v1961 = vpop.f32.mrb[0].mxu0
    %v1962 = vpop.f32.mrb[0].mxu0
    %v1963 = vadd.f32 %v1662, %v1962
    %v1964 = vpop.f32.mrb[0].mxu0
    %1965 = vmatprep.mubr.bf16.mxu0 0
    %1966 = vmatmul.mubr.bf16.gmra.mrb[0].mxu0 %v1836
    %v1967 = vpop.f32.mrb[0].mxu0
    %v1968 = vadd.f32 %v1667, %v1967
    %v1969 = vpop.f32.mrb[0].mxu0
    %v1970 = vpop.f32.mrb[0].mxu0
    %v1971 = vadd.f32 %v1672, %v1970
    %v1972 = vpop.f32.mrb[0].mxu0
    %1973 = vmatprep.mubr.bf16.mxu0 0
    %1974 = vmatmul.mubr.bf16.gmra.mrb[0].mxu0 %v1839
    %v1975 = vpop.f32.mrb[0].mxu0
    %v1976 = vadd.f32 %v1677, %v1975
    %v1977 = vpop.f32.mrb[0].mxu0
    %v1978 = vpop.f32.mrb[0].mxu0
    %v1979 = vadd.f32 %v1682, %v1978
    %v1980 = vpop.f32.mrb[0].mxu0
    %1981 = vmatprep.mubr.bf16.mxu0 0
    %1982 = vmatmul.mubr.bf16.gmra.mrb[0].mxu0 %v1842
    %v1983 = vpop.f32.mrb[0].mxu0
    %v1984 = vadd.f32 %v1687, %v1983
    %v1985 = vpop.f32.mrb[0].mxu0
    %v1986 = vpop.f32.mrb[0].mxu0
    %v1987 = vadd.f32 %v1692, %v1986
    %v1988 = vpop.f32.mrb[0].mxu0
    %1989 = vmatprep.mubr.bf16.mxu0 0
    %1990 = vmatmul.mubr.bf16.gmra.mrb[0].mxu0 %v1845
    %v1991 = vpop.f32.mrb[0].mxu0
    %v1992 = vadd.f32 %v1697, %v1991
    %v1993 = vpop.f32.mrb[0].mxu0
    %v1994 = vpop.f32.mrb[0].mxu0
    %v1995 = vadd.f32 %v1702, %v1994
    %v1996 = vpop.f32.mrb[0].mxu0
    %1997 = vmatprep.mubr.bf16.mxu0 0
    %1998 = vmatmul.mubr.bf16.gmra.mrb[0].mxu0 %v1848
    %v1999 = vpop.f32.mrb[0].mxu0
    %v2000 = vadd.f32 %v1707, %v1999
    %v2001 = vpop.f32.mrb[0].mxu0
    %v2002 = vpop.f32.mrb[0].mxu0
    %v2003 = vadd.f32 %v1712, %v2002
    %v2004 = vpop.f32.mrb[0].mxu0
    %2005 = vmatprep.mubr.bf16.mxu0 0
    %2006 = vmatmul.mubr.bf16.gmra.mrb[0].mxu0 %v1851
    %v2007 = vpop.f32.mrb[0].mxu0
    %v2008 = vadd.f32 %v1717, %v2007
    %v2009 = vpop.f32.mrb[0].mxu0
    %v2010 = vpop.f32.mrb[0].mxu0
    %v2011 = vadd.f32 %v1722, %v2010
    %v2012 = vpop.f32.mrb[0].mxu0
    %2013 = vdwg.mxu0
    %v2014 = vpack.c.bf16 %v1891, %v1888
    %v2015 = vpack.c.bf16 %v1899, %v1896
    %v2016 = vpack.c.bf16 %v1907, %v1904
    %v2017 = vpack.c.bf16 %v1915, %v1912
    %v2018 = vpack.c.bf16 %v1923, %v1920
    %v2019 = vpack.c.bf16 %v1931, %v1928
    %v2020 = vpack.c.bf16 %v1939, %v1936
    %v2021 = vpack.c.bf16 %v1947, %v1944
    %v2022 = vpack.c.bf16 %v1955, %v1952
    %v2023 = vpack.c.bf16 %v1963, %v1960
    %v2024 = vpack.c.bf16 %v1971, %v1968
    %v2025 = vpack.c.bf16 %v1979, %v1976
    %v2026 = vpack.c.bf16 %v1987, %v1984
    %v2027 = vpack.c.bf16 %v1995, %v1992
    %v2028 = vpack.c.bf16 %v2003, %v2000
    %v2029 = vpack.c.bf16 %v2011, %v2008
    %v2046 = vunpack.c.l.b16 %v2014
    %v2047 = vunpack.c.h.b16 %v2014
    %v2048 = vunpack.c.l.b16 %v2015
    %v2049 = vunpack.c.h.b16 %v2015
    %v2050 = vunpack.c.l.b16 %v2016
    %v2051 = vunpack.c.h.b16 %v2016
    %v2052 = vunpack.c.l.b16 %v2017
    %v2053 = vunpack.c.h.b16 %v2017
    %v2054 = vunpack.c.l.b16 %v2018
    %v2055 = vunpack.c.h.b16 %v2018
    %v2056 = vunpack.c.l.b16 %v2019
    %v2057 = vunpack.c.h.b16 %v2019
    %v2058 = vunpack.c.l.b16 %v2020
    %v2059 = vunpack.c.h.b16 %v2020
    %v2060 = vunpack.c.l.b16 %v2021
    %v2061 = vunpack.c.h.b16 %v2021
    %v2062 = vunpack.c.l.b16 %v2022
    %v2063 = vunpack.c.h.b16 %v2022
    %v2064 = vunpack.c.l.b16 %v2023
    %v2065 = vunpack.c.h.b16 %v2023
    %v2066 = vunpack.c.l.b16 %v2024
    %v2067 = vunpack.c.h.b16 %v2024
    %v2068 = vunpack.c.l.b16 %v2025
    %v2069 = vunpack.c.h.b16 %v2025
    %v2070 = vunpack.c.l.b16 %v2026
    %v2071 = vunpack.c.h.b16 %v2026
    %v2072 = vunpack.c.l.b16 %v2027
    %v2073 = vunpack.c.h.b16 %v2027
    %v2074 = vunpack.c.l.b16 %v2028
    %v2075 = vunpack.c.h.b16 %v2028
    %v2076 = vunpack.c.l.b16 %v2029
    %v2077 = vunpack.c.h.b16 %v2029
    %v2078 = vpack.c.b16 %v2046, %v2046
    %v2079 = vpack.c.b16 %v2047, %v2047
    %v2080 = vpack.c.b16 %v2048, %v2048
    %v2081 = vpack.c.b16 %v2049, %v2049
    %v2082 = vpack.c.b16 %v2050, %v2050
    %v2083 = vpack.c.b16 %v2051, %v2051
    %v2084 = vpack.c.b16 %v2052, %v2052
    %v2085 = vpack.c.b16 %v2053, %v2053
    %v2086 = vpack.c.b16 %v2054, %v2054
    %v2087 = vpack.c.b16 %v2055, %v2055
    %v2088 = vpack.c.b16 %v2056, %v2056
    %v2089 = vpack.c.b16 %v2057, %v2057
    %v2090 = vpack.c.b16 %v2058, %v2058
    %v2091 = vpack.c.b16 %v2059, %v2059
    %v2092 = vpack.c.b16 %v2060, %v2060
    %v2093 = vpack.c.b16 %v2061, %v2061
    %v2094 = vpack.c.b16 %v2062, %v2062
    %v2095 = vpack.c.b16 %v2063, %v2063
    %v2096 = vpack.c.b16 %v2064, %v2064
    %v2097 = vpack.c.b16 %v2065, %v2065
    %v2098 = vpack.c.b16 %v2066, %v2066
    %v2099 = vpack.c.b16 %v2067, %v2067
    %v2100 = vpack.c.b16 %v2068, %v2068
    %v2101 = vpack.c.b16 %v2069, %v2069
    %v2102 = vpack.c.b16 %v2070, %v2070
    %v2103 = vpack.c.b16 %v2071, %v2071
    %v2104 = vpack.c.b16 %v2072, %v2072
    %v2105 = vpack.c.b16 %v2073, %v2073
    %v2106 = vpack.c.b16 %v2074, %v2074
    %v2107 = vpack.c.b16 %v2075, %v2075
    %v2108 = vpack.c.b16 %v2076, %v2076
    %v2109 = vpack.c.b16 %v2077, %v2077
    %2142 = vst [vmem:[#allocation2] sm:$0xf] %v2078
    %2143 = vst [vmem:[#allocation2 + $0x4] sm:$0xf] %v2079
    %2144 = vst [vmem:[#allocation2 + $0x8] sm:$0xf] %v2080
    %2145 = vst [vmem:[#allocation2 + $0xc] sm:$0xf] %v2081
    %2146 = vst [vmem:[#allocation2 + $0x10] sm:$0xf] %v2082
    %2147 = vst [vmem:[#allocation2 + $0x14] sm:$0xf] %v2083
    %2148 = vst [vmem:[#allocation2 + $0x18] sm:$0xf] %v2084
    %2149 = vst [vmem:[#allocation2 + $0x1c] sm:$0xf] %v2085
    %2150 = vst [vmem:[#allocation2 + $0x20] sm:$0xf] %v2086
    %2151 = vst [vmem:[#allocation2 + $0x24] sm:$0xf] %v2087
    %2152 = vst [vmem:[#allocation2 + $0x28] sm:$0xf] %v2088
    %2153 = vst [vmem:[#allocation2 + $0x2c] sm:$0xf] %v2089
    %2154 = vst [vmem:[#allocation2 + $0x30] sm:$0xf] %v2090
    %2155 = vst [vmem:[#allocation2 + $0x34] sm:$0xf] %v2091
    %2156 = vst [vmem:[#allocation2 + $0x38] sm:$0xf] %v2092
    %2157 = vst [vmem:[#allocation2 + $0x3c] sm:$0xf] %v2093
    %2158 = vst [vmem:[#allocation2 + $0x40] sm:$0xf] %v2094
    %2159 = vst [vmem:[#allocation2 + $0x44] sm:$0xf] %v2095
    %2160 = vst [vmem:[#allocation2 + $0x48] sm:$0xf] %v2096
    %2161 = vst [vmem:[#allocation2 + $0x4c] sm:$0xf] %v2097
    %2162 = vst [vmem:[#allocation2 + $0x50] sm:$0xf] %v2098
    %2163 = vst [vmem:[#allocation2 + $0x54] sm:$0xf] %v2099
    %2164 = vst [vmem:[#allocation2 + $0x58] sm:$0xf] %v2100
    %2165 = vst [vmem:[#allocation2 + $0x5c] sm:$0xf] %v2101
    %2166 = vst [vmem:[#allocation2 + $0x60] sm:$0xf] %v2102
    %2167 = vst [vmem:[#allocation2 + $0x64] sm:$0xf] %v2103
    %2168 = vst [vmem:[#allocation2 + $0x68] sm:$0xf] %v2104
    %2169 = vst [vmem:[#allocation2 + $0x6c] sm:$0xf] %v2105
    %2170 = vst [vmem:[#allocation2 + $0x70] sm:$0xf] %v2106
    %2171 = vst [vmem:[#allocation2 + $0x74] sm:$0xf] %v2107
    %2172 = vst [vmem:[#allocation2 + $0x78] sm:$0xf] %v2108
    %2173 = vst [vmem:[#allocation2 + $0x7c] sm:$0xf] %v2109
    // Predicated region
    $region18: #{tpu_custom_call.1} parent=1 // pred_check
      _
    $region19: #{tpu_custom_call.1} parent=1 // pred_check_branch
      %2175 = sbr.rel (0) target = $region21
    $region20: #{tpu_custom_call.1} parent=1 // pred_region
      %s2177 = ssub.s32 2048, 2048
      %2178 = vsyncadd [#allocation3], %s2177
      %s2179 = sshll.u32 [#allocation2], 4
      %s2180 = int_to_ptr.vmem [resolvable:$true] %s2179
      %2185 = dma.vmem_to_hbm [thread:$0]  %s2180, 2048, %s4, [#allocation3], 64, 64, 4
    $region21: #{tpu_custom_call.1} parent=1 // pred_fallthru
      _
    // Predicated region
    $region22: #{tpu_custom_call.1} parent=1 // pred_check
      _
    $region23: #{tpu_custom_call.1} parent=1 // pred_check_branch
      %2187 = sbr.rel (0) target = $region25
    $region24: #{tpu_custom_call.1} parent=1 // pred_region
      %2188 = dma.done [#allocation3], 2048
    $region25: #{tpu_custom_call.1} parent=1 // pred_fallthru
      _
    %2189 = vsyncpa [#allocation3], 1

</llo_original>
